<compile_context>
chip_gen: v7x
topology: tpu7x:2x2x1
jax: 0.10.0
libtpu: 0.0.40
codegen_flags: <defaults>
</compile_context>

<pallas_src>
import numpy as np
import jax
import jax.numpy as jnp
from jax.experimental import pallas as pl
from jax.experimental.pallas import tpu as pltpu


# --------------------------- recurrence kernel -------------------------------
def _gru_block_kernel(x_ref, h0_ref,
                      wx_ref, whzr_ref, bzr_ref, whh_ref, bh_ref,
                      hseq_ref, hcarry_ref):
    """Runs Tb GRU timesteps per grid invocation.

    hcarry_ref has a constant output block index across the (sequential) time
    grid axis, so it stays resident in VMEM and acts as the recurrent carry.
    """
    blk = pl.program_id(0)

    @pl.when(blk == 0)
    def _():
        hcarry_ref[...] = h0_ref[...]

    # Resident weights (loaded once per grid step from VMEM-resident blocks).
    wx = wx_ref[...]        # (I, 3H): [Wzx^T | Wrx^T | Whx^T]
    whzr = whzr_ref[...]    # (H, 2H): [Wzh^T | Wrh^T]
    whh = whh_ref[...]      # (H, H):  Whh^T
    bzr = bzr_ref[...]      # (1, 2H): [bz | br]
    bh = bh_ref[...]        # (1, H):  bh + noise
    cdt = wx.dtype          # compute dtype for MXU operands (f32 or bf16)

    H = hcarry_ref.shape[1]
    Tb = x_ref.shape[0]

    def step(t, h):
        x = x_ref[t]                                           # (B, I)
        gx = jnp.dot(x.astype(cdt), wx,
                     preferred_element_type=jnp.float32)       # (B, 3H)
        a_zr = (gx[:, :2 * H]
                + jnp.dot(h.astype(cdt), whzr,
                          preferred_element_type=jnp.float32)
                + bzr)                                         # (B, 2H)
        z = jax.nn.sigmoid(a_zr[:, :H])
        r = jax.nn.sigmoid(a_zr[:, H:])
        h_pre = (gx[:, 2 * H:] + bh
                 + jnp.dot((r * h).astype(cdt), whh,
                           preferred_element_type=jnp.float32))
        h_new = (1.0 - z) * h + z * jnp.tanh(h_pre)            # 'tanh' activation
        hseq_ref[t] = h_new
        return h_new

    h_last = jax.lax.fori_loop(0, Tb, step, hcarry_ref[...], unroll=True)
    hcarry_ref[...] = h_last


# ----------------------------- readout kernel --------------------------------
def _readout_kernel(h_ref, yw_ref, by_ref, y_ref):
    yw = yw_ref[...]
    y_ref[...] = jax.nn.sigmoid(
        jnp.dot(h_ref[...].astype(yw.dtype), yw,
                preferred_element_type=jnp.float32)
        + by_ref[...])


# ------------------------- one-time weight packing ---------------------------
def pack_params(params, noise, input_size, weight_dtype=jnp.float32):
    """Pre-transpose / fuse weights once; reuse across all forward calls.

    weight_dtype=jnp.bfloat16 is appropriate on v6e/v7x (bf16-native MXU);
    keep float32 on v5e or when tight numerical tolerances are needed.
    """
    f32 = jnp.float32
    I = input_size
    Wz = params["Wz"].astype(f32)
    Wr = params["Wr"].astype(f32)
    Wh = params["Wh"].astype(f32)

    # (I, 3H): x-side columns of all three gates  [Wzx^T | Wrx^T | Whx^T]
    wx_all = jnp.concatenate([Wz[:, :I].T, Wr[:, :I].T, Wh[:, :I].T], axis=1)
    # (H, 2H): h-side columns of z and r only (no zero block; the candidate's
    # h-side goes through (r*h) @ Whh separately).
    wh_zr = jnp.concatenate([Wz[:, I:].T, Wr[:, I:].T], axis=1)
    # Biases kept f32; noise folded into the candidate bias.
    b_zr = jnp.concatenate([params["bz"].astype(f32),
                            params["br"].astype(f32)])[None, :]     # (1, 2H)
    b_h = (params["bh"].astype(f32) + noise.astype(f32))[None, :]   # (1, H)

    whh = Wh[:, I:].T                         # (H, H)
    yw = params["Y"].astype(f32).T            # (H, O)
    by = params["bY"].astype(f32)[None, :]    # (1, O)

    return {
        "wx_all": wx_all.astype(weight_dtype),
        "wh_zr": wh_zr.astype(weight_dtype),
        "b_zr": b_zr,
        "b_h": b_h,
        "whh": whh.astype(weight_dtype),
        "yw": yw.astype(weight_dtype),
        "by": by,
    }


def _nbytes(a):
    return int(a.size) * a.dtype.itemsize


# ----------------------------- sequence wrapper -------------------------------
def modular_policy_gru_sequence(x_seq, h0, packed, *, time_block=4):
    """Run the GRU over a whole (T, B, I) sequence.

    Phase 1: one pallas_call over time blocks producing all hidden states.
    Phase 2: one batched pallas_call projecting hidden states to outputs.
    Returns (y_seq (T,B,O), h_final (B,H)).
    """
    T, B, I = x_seq.shape
    H = h0.shape[1]
    O = packed["yw"].shape[1]
    f32 = jnp.float32
    assert T % time_block == 0, "T must be a multiple of time_block"
    n_blocks = T // time_block

    const2 = lambda t: (0, 0)

    # ---- VMEM budget: resident weights (double-buffered by default) +
    #      double-buffered x / h_seq slabs + headroom; clamp for v7x (64 MiB/TC).
    w_bytes = sum(_nbytes(packed[k]) for k in
                  ("wx_all", "wh_zr", "b_zr", "whh", "b_h"))
    x_blk_bytes = time_block * B * I * 4
    h_blk_bytes = time_block * B * H * 4
    need = 2 * w_bytes + 2 * (x_blk_bytes + h_blk_bytes) + (2 << 20)
    vmem_limit = int(min(max(need, 16 * 1024 * 1024), 56 * 1024 * 1024))

    rec_cost = pl.CostEstimate(
        flops=int(2 * T * B * (3 * I * H + 3 * H * H)),
        transcendentals=int(T * B * 3 * H),
        bytes_accessed=int(w_bytes + T * B * (I + H) * 4 + 2 * B * H * 4),
    )

    in_specs = [
        pl.BlockSpec((time_block, B, I), lambda t: (t, 0, 0)),   # x slab streamed
        pl.BlockSpec((B, H), const2),                            # h0 (read @ blk 0)
        pl.BlockSpec(packed["wx_all"].shape, const2),            # weights stay
        pl.BlockSpec(packed["wh_zr"].shape, const2),             #   resident in
        pl.BlockSpec(packed["b_zr"].shape, const2),              #   VMEM across
        pl.BlockSpec(packed["whh"].shape, const2),               #   the whole
        pl.BlockSpec(packed["b_h"].shape, const2),               #   sequence
    ]
    out_specs = (
        pl.BlockSpec((time_block, B, H), lambda t: (t, 0, 0)),   # h_t slab out
        pl.BlockSpec((B, H), const2),                            # carried h
    )

    h_seq, h_final = pl.pallas_call(
        _gru_block_kernel,
        grid=(n_blocks,),
        in_specs=in_specs,
        out_specs=out_specs,
        out_shape=(jax.ShapeDtypeStruct((T, B, H), f32),
                   jax.ShapeDtypeStruct((B, H), f32)),
        compiler_params=pltpu.CompilerParams(
            dimension_semantics=("arbitrary",),   # time is sequential
            vmem_limit_bytes=vmem_limit),
        cost_estimate=rec_cost,
    )(x_seq.astype(f32), h0.astype(f32),
      packed["wx_all"], packed["wh_zr"], packed["b_zr"],
      packed["whh"], packed["b_h"])

    # ---- Phase 2: batched readout projection (off the recurrent critical path)
    rows = T * B
    rows_per_block = rows
    cap = 2048
    if rows > cap:
        rows_per_block = B * time_block
        while rows_per_block * 2 <= cap and rows % (rows_per_block * 2) == 0:
            rows_per_block *= 2

    ro_cost = pl.CostEstimate(
        flops=int(2 * rows * H * O),
        transcendentals=int(rows * O),
        bytes_accessed=int(rows * (H + O) * 4 + _nbytes(packed["yw"])
                           + _nbytes(packed["by"])),
    )

    h_flat = h_seq.reshape(rows, H)
    y_flat = pl.pallas_call(
        _readout_kernel,
        grid=(rows // rows_per_block,),
        in_specs=[pl.BlockSpec((rows_per_block, H), lambda i: (i, 0)),
                  pl.BlockSpec(packed["yw"].shape, lambda i: (0, 0)),
                  pl.BlockSpec(packed["by"].shape, lambda i: (0, 0))],
        out_specs=pl.BlockSpec((rows_per_block, O), lambda i: (i, 0)),
        out_shape=jax.ShapeDtypeStruct((rows, O), f32),
        compiler_params=pltpu.CompilerParams(
            dimension_semantics=("parallel",)),
        cost_estimate=ro_cost,
    )(h_flat, packed["yw"], packed["by"])

    y_seq = y_flat.reshape(T, B, O)
    return y_seq, h_final


# --------------------- __init__-equivalent parameter setup -------------------
def build_params(input_size, module_size, output_size,
                 vision_mask, proprio_mask, task_mask,
                 connectivity_mask, output_mask,
                 vision_dim, proprio_dim, task_dim,
                 input_gain=1.0, seed=0):
    rng = np.random.default_rng(seed)
    hidden_size = sum(module_size)
    num_modules = len(module_size)

    def xavier_uniform(shape, gain):
        fan_out, fan_in = shape
        bound = gain * np.sqrt(6.0 / (fan_in + fan_out))
        return rng.uniform(-bound, bound, size=shape).astype(np.float32)

    def recurrent_normal(shape):
        return rng.normal(0.0, 1.0 / np.sqrt(hidden_size), size=shape).astype(np.float32)

    def make_W():
        return np.concatenate(
            [xavier_uniform((hidden_size, input_size), input_gain),
             recurrent_normal((hidden_size, hidden_size))], axis=1)

    Wz, Wr, Wh = make_W(), make_W(), make_W()
    bz = np.zeros(hidden_size, np.float32)
    br = np.zeros(hidden_size, np.float32)
    bh = np.zeros(hidden_size, np.float32)
    Y = xavier_uniform((output_size, hidden_size), 1.0)
    bY = np.full(output_size, -5.0, np.float32)

    module_dims = []
    for m in range(num_modules):
        if m > 0:
            module_dims.append(np.arange(module_size[m]) + module_dims[-1][-1] + 1)
        else:
            module_dims.append(np.arange(module_size[m]))

    h_prob = np.zeros((hidden_size, input_size + hidden_size), np.float32)
    for i in range(hidden_size):
        i_module = 0
        for m in range(num_modules):
            if i in module_dims[m]:
                i_module = m
        for j in range(input_size + hidden_size):
            module_type = 'hidden'
            if j < input_size:
                if j in vision_dim:
                    module_type = 'vision'
                elif j in proprio_dim:
                    module_type = 'proprio'
                elif j in task_dim:
                    module_type = 'task'
            if module_type == 'hidden':
                j_module = 0
                for m in range(num_modules):
                    if j in module_dims[m] + input_size:
                        j_module = m
                h_prob[i, j] = connectivity_mask[i_module, j_module]
            elif module_type == 'vision':
                h_prob[i, j] = vision_mask[i_module]
            elif module_type == 'proprio':
                h_prob[i, j] = proprio_mask[i_module]
            elif module_type == 'task':
                h_prob[i, j] = task_mask[i_module]

    y_prob = np.zeros((output_size, hidden_size), np.float32)
    for j in range(hidden_size):
        j_module = 0
        for m in range(num_modules):
            if j in module_dims[m]:
                j_module = m
        y_prob[:, j] = output_mask[j_module]

    mask_conn = rng.binomial(1, h_prob).astype(np.float32)
    mask_out = rng.binomial(1, y_prob).astype(np.float32)

    return {
        "Wz": jnp.asarray(Wz * mask_conn), "bz": jnp.asarray(bz),
        "Wr": jnp.asarray(Wr * mask_conn), "br": jnp.asarray(br),
        "Wh": jnp.asarray(Wh * mask_conn), "bh": jnp.asarray(bh),
        "Y": jnp.asarray(Y * mask_out), "bY": jnp.asarray(bY),
    }


# ------------------------------ reference (JAX) ------------------------------
def _reference_step(x, h_prev, p, noise):
    hp = jax.lax.Precision.HIGHEST
    concat = jnp.concatenate([x, h_prev], axis=1)
    z = jax.nn.sigmoid(jnp.dot(concat, p["Wz"].T, precision=hp) + p["bz"])
    r = jax.nn.sigmoid(jnp.dot(concat, p["Wr"].T, precision=hp) + p["br"])
    concat_h = jnp.concatenate([x, r * h_prev], axis=1)
    h_tilda = jnp.tanh(jnp.dot(concat_h, p["Wh"].T, precision=hp) + p["bh"] + noise)
    h_new = (1.0 - z) * h_prev + z * h_tilda
    y = jax.nn.sigmoid(jnp.dot(h_new, p["Y"].T, precision=hp) + p["bY"])
    return y, h_new


def _reference_sequence(x_seq, h0, p, noise):
    def step(h, x):
        y, h_new = _reference_step(x, h, p, noise)
        return h_new, y
    h_final, y_seq = jax.lax.scan(step, h0, x_seq)
    return y_seq, h_final


# ---------------------------------- main -------------------------------------
if __name__ == "__main__":
    # Small configuration consistent with the module.  H = 128 so each gate's
    # column block is 128-lane aligned (see lane-alignment note above).
    input_size = 16
    module_size = [64, 64]          # hidden_size = 128
    hidden_size = sum(module_size)
    output_size = 8
    batch = 8                       # multiple of 8 (f32 sublane)
    seq_len = 16
    time_block = 4                  # 4 grid steps x 4 unrolled timesteps

    vision_dim = list(range(0, 6))
    proprio_dim = list(range(6, 12))
    task_dim = list(range(12, 16))
    vision_mask = [1.0, 0.5]
    proprio_mask = [0.5, 1.0]
    task_mask = [1.0, 1.0]
    connectivity_mask = np.array([[1.0, 0.5], [0.5, 1.0]], np.float32)
    output_mask = [0.0, 1.0]
    # connectivity_delay = zeros -> max_delay == 0 branch of forward()

    params = build_params(input_size, module_size, output_size,
                          vision_mask, proprio_mask, task_mask,
                          connectivity_mask, output_mask,
                          vision_dim, proprio_dim, task_dim,
                          input_gain=1.0, seed=0)

    key = jax.random.PRNGKey(0)
    kx, kh, kn = jax.random.split(key, 3)
    x_seq = jax.random.normal(kx, (seq_len, batch, input_size), dtype=jnp.float32)
    h0 = jnp.tanh(jax.random.normal(kh, (batch, hidden_size), dtype=jnp.float32))
    # deterministic noise vector folded into bh (see TODO at top of file)
    noise = jax.random.normal(kn, (hidden_size,), dtype=jnp.float32) * 0.001

    packed = pack_params(params, noise, input_size)   # one-time preprocessing
    # (on v6e/v7x: pack_params(..., weight_dtype=jnp.bfloat16) and loosen tols)

    y_seq, h_final = modular_policy_gru_sequence(x_seq, h0, packed,
                                                 time_block=time_block)
    jax.block_until_ready((y_seq, h_final))

    y_ref, h_ref = _reference_sequence(x_seq, h0, params, noise)
    np.testing.assert_allclose(np.asarray(y_seq), np.asarray(y_ref),
                               rtol=1e-4, atol=1e-4)
    np.testing.assert_allclose(np.asarray(h_final), np.asarray(h_ref),
                               rtol=1e-4, atol=1e-4)

    print("KERNEL_OK")
</pallas_src>

<mosaic_0001>
module attributes {stable_mosaic.version = 11 : i64} {
  func.func @_gru_block_kernel(%arg0: i32, %arg1: memref<4x8x16xf32, #tpu.memory_space<vmem>>, %arg2: memref<8x128xf32, #tpu.memory_space<vmem>>, %arg3: memref<16x384xf32, #tpu.memory_space<vmem>>, %arg4: memref<128x256xf32, #tpu.memory_space<vmem>>, %arg5: memref<1x256xf32, #tpu.memory_space<vmem>>, %arg6: memref<128x128xf32, #tpu.memory_space<vmem>>, %arg7: memref<1x128xf32, #tpu.memory_space<vmem>>, %arg8: memref<4x8x128xf32, #tpu.memory_space<vmem>>, %arg9: memref<8x128xf32, #tpu.memory_space<vmem>>) attributes {dimension_semantics = [#tpu.dimension_semantics<arbitrary>], iteration_bounds = array<i64: 4>, scalar_prefetch = 0 : i64, scratch_operands = 0 : i64, tpu.core_type = #tpu.core_type<tc>, window_params = [{transform_indices = @transform_0, window_bounds = array<i64: 4, 8, 16>}, {pipeline_mode = #tpu.pipeline_mode<synchronous>, transform_indices = @transform_1, window_bounds = array<i64: 8, 128>}, {pipeline_mode = #tpu.pipeline_mode<synchronous>, transform_indices = @transform_2, window_bounds = array<i64: 16, 384>}, {pipeline_mode = #tpu.pipeline_mode<synchronous>, transform_indices = @transform_3, window_bounds = array<i64: 128, 256>}, {pipeline_mode = #tpu.pipeline_mode<synchronous>, transform_indices = @transform_4, window_bounds = array<i64: 1, 256>}, {pipeline_mode = #tpu.pipeline_mode<synchronous>, transform_indices = @transform_5, window_bounds = array<i64: 128, 128>}, {pipeline_mode = #tpu.pipeline_mode<synchronous>, transform_indices = @transform_6, window_bounds = array<i64: 1, 128>}, {transform_indices = @transform_7, window_bounds = array<i64: 4, 8, 128>}, {pipeline_mode = #tpu.pipeline_mode<synchronous>, transform_indices = @transform_8, window_bounds = array<i64: 8, 128>}]} {
    %c0_i32 = arith.constant 0 : i32
    %0 = arith.cmpi eq, %arg0, %c0_i32 : i32
    %1 = arith.extui %0 : i1 to i32
    %c0_i32_0 = arith.constant 0 : i32
    %2 = arith.cmpi ne, %1, %c0_i32_0 : i32
    scf.if %2 {
      %c0_54 = arith.constant 0 : index
      %c0_55 = arith.constant 0 : index
      %158 = vector.load %arg2[%c0_54, %c0_55] : memref<8x128xf32, #tpu.memory_space<vmem>>, vector<8x128xf32>
      %c0_56 = arith.constant 0 : index
      %c0_57 = arith.constant 0 : index
      %159 = vector.load %arg9[%c0_56, %c0_57] : memref<8x128xf32, #tpu.memory_space<vmem>>, vector<8x128xf32>
      tpu.vector_store %arg9[%c0_56, %c0_57], %158 {strides = array<i32>} : memref<8x128xf32, #tpu.memory_space<vmem>>, vector<8x128xf32>,
    } else {
    }
    %c0 = arith.constant 0 : index
    %c0_1 = arith.constant 0 : index
    %3 = vector.load %arg3[%c0, %c0_1] : memref<16x384xf32, #tpu.memory_space<vmem>>, vector<16x384xf32>
    %c0_2 = arith.constant 0 : index
    %c0_3 = arith.constant 0 : index
    %4 = vector.load %arg4[%c0_2, %c0_3] : memref<128x256xf32, #tpu.memory_space<vmem>>, vector<128x256xf32>
    %c0_4 = arith.constant 0 : index
    %c0_5 = arith.constant 0 : index
    %5 = vector.load %arg6[%c0_4, %c0_5] : memref<128x128xf32, #tpu.memory_space<vmem>>, vector<128x128xf32>
    %c0_6 = arith.constant 0 : index
    %c0_7 = arith.constant 0 : index
    %6 = vector.load %arg5[%c0_6, %c0_7] : memref<1x256xf32, #tpu.memory_space<vmem>>, vector<1x256xf32>
    %c0_8 = arith.constant 0 : index
    %c0_9 = arith.constant 0 : index
    %7 = vector.load %arg7[%c0_8, %c0_9] : memref<1x128xf32, #tpu.memory_space<vmem>>, vector<1x128xf32>
    %c0_10 = arith.constant 0 : index
    %c0_11 = arith.constant 0 : index
    %8 = vector.load %arg9[%c0_10, %c0_11] : memref<8x128xf32, #tpu.memory_space<vmem>>, vector<8x128xf32>
    %c0_i32_12 = arith.constant 0 : i32
    %9 = arith.index_cast %c0_i32_12 : i32 to index
    %c0_13 = arith.constant 0 : index
    %c0_14 = arith.constant 0 : index
    %10 = vector.load %arg1[%9, %c0_13, %c0_14] : memref<4x8x16xf32, #tpu.memory_space<vmem>>, vector<1x8x16xf32>
    %11 = vector.shape_cast %10 : vector<1x8x16xf32> to vector<8x16xf32>
    %cst = arith.constant dense<0.000000e+00> : vector<8x384xf32>
    %12 = tpu.matmul %11, %3, %cst {dimension_numbers = #tpu.dot_dimension_numbers<[1], [0], [0], [1], [0, 0, 1, 1], [], []>} : vector<8x16xf32>, vector<16x384xf32>, vector<8x384xf32> -> vector<8x384xf32>
    %13 = vector.extract_strided_slice %12 {offsets = [0, 0], sizes = [8, 256], strides = [1, 1]} : vector<8x384xf32> to vector<8x256xf32>
    %cst_15 = arith.constant dense<0.000000e+00> : vector<8x256xf32>
    %14 = tpu.matmul %8, %4, %cst_15 {dimension_numbers = #tpu.dot_dimension_numbers<[1], [0], [0], [1], [0, 0, 1, 1], [], []>} : vector<8x128xf32>, vector<128x256xf32>, vector<8x256xf32> -> vector<8x256xf32>
    %15 = arith.addf %13, %14 : vector<8x256xf32>
    %16 = vector.broadcast %6 : vector<1x256xf32> to vector<8x256xf32>
    %17 = arith.addf %15, %16 : vector<8x256xf32>
    %18 = vector.extract_strided_slice %17 {offsets = [0, 0], sizes = [8, 128], strides = [1, 1]} : vector<8x256xf32> to vector<8x128xf32>
    %19 = arith.negf %18 : vector<8x128xf32>
    %20 = math.exp %19 : vector<8x128xf32>
    %cst_16 = arith.constant 1.000000e+00 : f32
    %21 = vector.broadcast %cst_16 : f32 to vector<8x128xf32>
    %22 = arith.addf %21, %20 : vector<8x128xf32>
    %23 = arith.divf %21, %22 : vector<8x128xf32>
    %24 = vector.extract_strided_slice %17 {offsets = [0, 128], sizes = [8, 128], strides = [1, 1]} : vector<8x256xf32> to vector<8x128xf32>
    %25 = arith.negf %24 : vector<8x128xf32>
    %26 = math.exp %25 : vector<8x128xf32>
    %cst_17 = arith.constant 1.000000e+00 : f32
    %27 = vector.broadcast %cst_17 : f32 to vector<8x128xf32>
    %28 = arith.addf %27, %26 : vector<8x128xf32>
    %29 = arith.divf %27, %28 : vector<8x128xf32>
    %30 = vector.extract_strided_slice %12 {offsets = [0, 256], sizes = [8, 128], strides = [1, 1]} : vector<8x384xf32> to vector<8x128xf32>
    %31 = vector.broadcast %7 : vector<1x128xf32> to vector<8x128xf32>
    %32 = arith.addf %30, %31 : vector<8x128xf32>
    %33 = arith.mulf %29, %8 : vector<8x128xf32>
    %cst_18 = arith.constant dense<0.000000e+00> : vector<8x128xf32>
    %34 = tpu.matmul %33, %5, %cst_18 {dimension_numbers = #tpu.dot_dimension_numbers<[1], [0], [0], [1], [0, 0, 1, 1], [], []>} : vector<8x128xf32>, vector<128x128xf32>, vector<8x128xf32> -> vector<8x128xf32>
    %35 = arith.addf %32, %34 : vector<8x128xf32>
    %cst_19 = arith.constant 1.000000e+00 : f32
    %36 = vector.broadcast %cst_19 : f32 to vector<8x128xf32>
    %37 = arith.subf %36, %23 : vector<8x128xf32>
    %38 = arith.mulf %37, %8 : vector<8x128xf32>
    %39 = math.tanh %35 : vector<8x128xf32>
    %40 = arith.mulf %23, %39 : vector<8x128xf32>
    %41 = arith.addf %38, %40 : vector<8x128xf32>
    %42 = arith.index_cast %c0_i32_12 : i32 to index
    %c0_20 = arith.constant 0 : index
    %c0_21 = arith.constant 0 : index
    %43 = vector.load %arg8[%42, %c0_20, %c0_21] : memref<4x8x128xf32, #tpu.memory_space<vmem>>, vector<1x8x128xf32>
    %44 = vector.shape_cast %43 : vector<1x8x128xf32> to vector<8x128xf32>
    %45 = vector.shape_cast %41 : vector<8x128xf32> to vector<1x8x128xf32>
    tpu.vector_store %arg8[%42, %c0_20, %c0_21], %45 {strides = array<i32>} : memref<4x8x128xf32, #tpu.memory_space<vmem>>, vector<1x8x128xf32>,
    %c1_i32 = arith.constant 1 : i32
    %46 = arith.index_cast %c1_i32 : i32 to index
    %c0_22 = arith.constant 0 : index
    %c0_23 = arith.constant 0 : index
    %47 = vector.load %arg1[%46, %c0_22, %c0_23] : memref<4x8x16xf32, #tpu.memory_space<vmem>>, vector<1x8x16xf32>
    %48 = vector.shape_cast %47 : vector<1x8x16xf32> to vector<8x16xf32>
    %cst_24 = arith.constant dense<0.000000e+00> : vector<8x384xf32>
    %49 = tpu.matmul %48, %3, %cst_24 {dimension_numbers = #tpu.dot_dimension_numbers<[1], [0], [0], [1], [0, 0, 1, 1], [], []>} : vector<8x16xf32>, vector<16x384xf32>, vector<8x384xf32> -> vector<8x384xf32>
    %50 = vector.extract_strided_slice %49 {offsets = [0, 0], sizes = [8, 256], strides = [1, 1]} : vector<8x384xf32> to vector<8x256xf32>
    %cst_25 = arith.constant dense<0.000000e+00> : vector<8x256xf32>
    %51 = tpu.matmul %41, %4, %cst_25 {dimension_numbers = #tpu.dot_dimension_numbers<[1], [0], [0], [1], [0, 0, 1, 1], [], []>} : vector<8x128xf32>, vector<128x256xf32>, vector<8x256xf32> -> vector<8x256xf32>
    %52 = arith.addf %50, %51 : vector<8x256xf32>
    %53 = vector.broadcast %6 : vector<1x256xf32> to vector<8x256xf32>
    %54 = arith.addf %52, %53 : vector<8x256xf32>
    %55 = vector.extract_strided_slice %54 {offsets = [0, 0], sizes = [8, 128], strides = [1, 1]} : vector<8x256xf32> to vector<8x128xf32>
    %56 = arith.negf %55 : vector<8x128xf32>
    %57 = math.exp %56 : vector<8x128xf32>
    %cst_26 = arith.constant 1.000000e+00 : f32
    %58 = vector.broadcast %cst_26 : f32 to vector<8x128xf32>
    %59 = arith.addf %58, %57 : vector<8x128xf32>
    %60 = arith.divf %58, %59 : vector<8x128xf32>
    %61 = vector.extract_strided_slice %54 {offsets = [0, 128], sizes = [8, 128], strides = [1, 1]} : vector<8x256xf32> to vector<8x128xf32>
    %62 = arith.negf %61 : vector<8x128xf32>
    %63 = math.exp %62 : vector<8x128xf32>
    %cst_27 = arith.constant 1.000000e+00 : f32
    %64 = vector.broadcast %cst_27 : f32 to vector<8x128xf32>
    %65 = arith.addf %64, %63 : vector<8x128xf32>
    %66 = arith.divf %64, %65 : vector<8x128xf32>
    %67 = vector.extract_strided_slice %49 {offsets = [0, 256], sizes = [8, 128], strides = [1, 1]} : vector<8x384xf32> to vector<8x128xf32>
    %68 = vector.broadcast %7 : vector<1x128xf32> to vector<8x128xf32>
    %69 = arith.addf %67, %68 : vector<8x128xf32>
    %70 = arith.mulf %66, %41 : vector<8x128xf32>
    %cst_28 = arith.constant dense<0.000000e+00> : vector<8x128xf32>
    %71 = tpu.matmul %70, %5, %cst_28 {dimension_numbers = #tpu.dot_dimension_numbers<[1], [0], [0], [1], [0, 0, 1, 1], [], []>} : vector<8x128xf32>, vector<128x128xf32>, vector<8x128xf32> -> vector<8x128xf32>
    %72 = arith.addf %69, %71 : vector<8x128xf32>
    %cst_29 = arith.constant 1.000000e+00 : f32
    %73 = vector.broadcast %cst_29 : f32 to vector<8x128xf32>
    %74 = arith.subf %73, %60 : vector<8x128xf32>
    %75 = arith.mulf %74, %41 : vector<8x128xf32>
    %76 = math.tanh %72 : vector<8x128xf32>
    %77 = arith.mulf %60, %76 : vector<8x128xf32>
    %78 = arith.addf %75, %77 : vector<8x128xf32>
    %79 = arith.index_cast %c1_i32 : i32 to index
    %c0_30 = arith.constant 0 : index
    %c0_31 = arith.constant 0 : index
    %80 = vector.load %arg8[%79, %c0_30, %c0_31] : memref<4x8x128xf32, #tpu.memory_space<vmem>>, vector<1x8x128xf32>
    %81 = vector.shape_cast %80 : vector<1x8x128xf32> to vector<8x128xf32>
    %82 = vector.shape_cast %78 : vector<8x128xf32> to vector<1x8x128xf32>
    tpu.vector_store %arg8[%79, %c0_30, %c0_31], %82 {strides = array<i32>} : memref<4x8x128xf32, #tpu.memory_space<vmem>>, vector<1x8x128xf32>,
    %c2_i32 = arith.constant 2 : i32
    %83 = arith.index_cast %c2_i32 : i32 to index
    %c0_32 = arith.constant 0 : index
    %c0_33 = arith.constant 0 : index
    %84 = vector.load %arg1[%83, %c0_32, %c0_33] : memref<4x8x16xf32, #tpu.memory_space<vmem>>, vector<1x8x16xf32>
    %85 = vector.shape_cast %84 : vector<1x8x16xf32> to vector<8x16xf32>
    %cst_34 = arith.constant dense<0.000000e+00> : vector<8x384xf32>
    %86 = tpu.matmul %85, %3, %cst_34 {dimension_numbers = #tpu.dot_dimension_numbers<[1], [0], [0], [1], [0, 0, 1, 1], [], []>} : vector<8x16xf32>, vector<16x384xf32>, vector<8x384xf32> -> vector<8x384xf32>
    %87 = vector.extract_strided_slice %86 {offsets = [0, 0], sizes = [8, 256], strides = [1, 1]} : vector<8x384xf32> to vector<8x256xf32>
    %cst_35 = arith.constant dense<0.000000e+00> : vector<8x256xf32>
    %88 = tpu.matmul %78, %4, %cst_35 {dimension_numbers = #tpu.dot_dimension_numbers<[1], [0], [0], [1], [0, 0, 1, 1], [], []>} : vector<8x128xf32>, vector<128x256xf32>, vector<8x256xf32> -> vector<8x256xf32>
    %89 = arith.addf %87, %88 : vector<8x256xf32>
    %90 = vector.broadcast %6 : vector<1x256xf32> to vector<8x256xf32>
    %91 = arith.addf %89, %90 : vector<8x256xf32>
    %92 = vector.extract_strided_slice %91 {offsets = [0, 0], sizes = [8, 128], strides = [1, 1]} : vector<8x256xf32> to vector<8x128xf32>
    %93 = arith.negf %92 : vector<8x128xf32>
    %94 = math.exp %93 : vector<8x128xf32>
    %cst_36 = arith.constant 1.000000e+00 : f32
    %95 = vector.broadcast %cst_36 : f32 to vector<8x128xf32>
    %96 = arith.addf %95, %94 : vector<8x128xf32>
    %97 = arith.divf %95, %96 : vector<8x128xf32>
    %98 = vector.extract_strided_slice %91 {offsets = [0, 128], sizes = [8, 128], strides = [1, 1]} : vector<8x256xf32> to vector<8x128xf32>
    %99 = arith.negf %98 : vector<8x128xf32>
    %100 = math.exp %99 : vector<8x128xf32>
    %cst_37 = arith.constant 1.000000e+00 : f32
    %101 = vector.broadcast %cst_37 : f32 to vector<8x128xf32>
    %102 = arith.addf %101, %100 : vector<8x128xf32>
    %103 = arith.divf %101, %102 : vector<8x128xf32>
    %104 = vector.extract_strided_slice %86 {offsets = [0, 256], sizes = [8, 128], strides = [1, 1]} : vector<8x384xf32> to vector<8x128xf32>
    %105 = vector.broadcast %7 : vector<1x128xf32> to vector<8x128xf32>
    %106 = arith.addf %104, %105 : vector<8x128xf32>
    %107 = arith.mulf %103, %78 : vector<8x128xf32>
    %cst_38 = arith.constant dense<0.000000e+00> : vector<8x128xf32>
    %108 = tpu.matmul %107, %5, %cst_38 {dimension_numbers = #tpu.dot_dimension_numbers<[1], [0], [0], [1], [0, 0, 1, 1], [], []>} : vector<8x128xf32>, vector<128x128xf32>, vector<8x128xf32> -> vector<8x128xf32>
    %109 = arith.addf %106, %108 : vector<8x128xf32>
    %cst_39 = arith.constant 1.000000e+00 : f32
    %110 = vector.broadcast %cst_39 : f32 to vector<8x128xf32>
    %111 = arith.subf %110, %97 : vector<8x128xf32>
    %112 = arith.mulf %111, %78 : vector<8x128xf32>
    %113 = math.tanh %109 : vector<8x128xf32>
    %114 = arith.mulf %97, %113 : vector<8x128xf32>
    %115 = arith.addf %112, %114 : vector<8x128xf32>
    %116 = arith.index_cast %c2_i32 : i32 to index
    %c0_40 = arith.constant 0 : index
    %c0_41 = arith.constant 0 : index
    %117 = vector.load %arg8[%116, %c0_40, %c0_41] : memref<4x8x128xf32, #tpu.memory_space<vmem>>, vector<1x8x128xf32>
    %118 = vector.shape_cast %117 : vector<1x8x128xf32> to vector<8x128xf32>
    %119 = vector.shape_cast %115 : vector<8x128xf32> to vector<1x8x128xf32>
    tpu.vector_store %arg8[%116, %c0_40, %c0_41], %119 {strides = array<i32>} : memref<4x8x128xf32, #tpu.memory_space<vmem>>, vector<1x8x128xf32>,
    %c3_i32 = arith.constant 3 : i32
    %120 = arith.index_cast %c3_i32 : i32 to index
    %c0_42 = arith.constant 0 : index
    %c0_43 = arith.constant 0 : index
    %121 = vector.load %arg1[%120, %c0_42, %c0_43] : memref<4x8x16xf32, #tpu.memory_space<vmem>>, vector<1x8x16xf32>
    %122 = vector.shape_cast %121 : vector<1x8x16xf32> to vector<8x16xf32>
    %cst_44 = arith.constant dense<0.000000e+00> : vector<8x384xf32>
    %123 = tpu.matmul %122, %3, %cst_44 {dimension_numbers = #tpu.dot_dimension_numbers<[1], [0], [0], [1], [0, 0, 1, 1], [], []>} : vector<8x16xf32>, vector<16x384xf32>, vector<8x384xf32> -> vector<8x384xf32>
    %124 = vector.extract_strided_slice %123 {offsets = [0, 0], sizes = [8, 256], strides = [1, 1]} : vector<8x384xf32> to vector<8x256xf32>
    %cst_45 = arith.constant dense<0.000000e+00> : vector<8x256xf32>
    %125 = tpu.matmul %115, %4, %cst_45 {dimension_numbers = #tpu.dot_dimension_numbers<[1], [0], [0], [1], [0, 0, 1, 1], [], []>} : vector<8x128xf32>, vector<128x256xf32>, vector<8x256xf32> -> vector<8x256xf32>
    %126 = arith.addf %124, %125 : vector<8x256xf32>
    %127 = vector.broadcast %6 : vector<1x256xf32> to vector<8x256xf32>
    %128 = arith.addf %126, %127 : vector<8x256xf32>
    %129 = vector.extract_strided_slice %128 {offsets = [0, 0], sizes = [8, 128], strides = [1, 1]} : vector<8x256xf32> to vector<8x128xf32>
    %130 = arith.negf %129 : vector<8x128xf32>
    %131 = math.exp %130 : vector<8x128xf32>
    %cst_46 = arith.constant 1.000000e+00 : f32
    %132 = vector.broadcast %cst_46 : f32 to vector<8x128xf32>
    %133 = arith.addf %132, %131 : vector<8x128xf32>
    %134 = arith.divf %132, %133 : vector<8x128xf32>
    %135 = vector.extract_strided_slice %128 {offsets = [0, 128], sizes = [8, 128], strides = [1, 1]} : vector<8x256xf32> to vector<8x128xf32>
    %136 = arith.negf %135 : vector<8x128xf32>
    %137 = math.exp %136 : vector<8x128xf32>
    %cst_47 = arith.constant 1.000000e+00 : f32
    %138 = vector.broadcast %cst_47 : f32 to vector<8x128xf32>
    %139 = arith.addf %138, %137 : vector<8x128xf32>
    %140 = arith.divf %138, %139 : vector<8x128xf32>
    %141 = vector.extract_strided_slice %123 {offsets = [0, 256], sizes = [8, 128], strides = [1, 1]} : vector<8x384xf32> to vector<8x128xf32>
    %142 = vector.broadcast %7 : vector<1x128xf32> to vector<8x128xf32>
    %143 = arith.addf %141, %142 : vector<8x128xf32>
    %144 = arith.mulf %140, %115 : vector<8x128xf32>
    %cst_48 = arith.constant dense<0.000000e+00> : vector<8x128xf32>
    %145 = tpu.matmul %144, %5, %cst_48 {dimension_numbers = #tpu.dot_dimension_numbers<[1], [0], [0], [1], [0, 0, 1, 1], [], []>} : vector<8x128xf32>, vector<128x128xf32>, vector<8x128xf32> -> vector<8x128xf32>
    %146 = arith.addf %143, %145 : vector<8x128xf32>
    %cst_49 = arith.constant 1.000000e+00 : f32
    %147 = vector.broadcast %cst_49 : f32 to vector<8x128xf32>
    %148 = arith.subf %147, %134 : vector<8x128xf32>
    %149 = arith.mulf %148, %115 : vector<8x128xf32>
    %150 = math.tanh %146 : vector<8x128xf32>
    %151 = arith.mulf %134, %150 : vector<8x128xf32>
    %152 = arith.addf %149, %151 : vector<8x128xf32>
    %153 = arith.index_cast %c3_i32 : i32 to index
    %c0_50 = arith.constant 0 : index
    %c0_51 = arith.constant 0 : index
    %154 = vector.load %arg8[%153, %c0_50, %c0_51] : memref<4x8x128xf32, #tpu.memory_space<vmem>>, vector<1x8x128xf32>
    %155 = vector.shape_cast %154 : vector<1x8x128xf32> to vector<8x128xf32>
    %156 = vector.shape_cast %152 : vector<8x128xf32> to vector<1x8x128xf32>
    tpu.vector_store %arg8[%153, %c0_50, %c0_51], %156 {strides = array<i32>} : memref<4x8x128xf32, #tpu.memory_space<vmem>>, vector<1x8x128xf32>,
    %c4_i32 = arith.constant 4 : i32
    %c0_52 = arith.constant 0 : index
    %c0_53 = arith.constant 0 : index
    %157 = vector.load %arg9[%c0_52, %c0_53] : memref<8x128xf32, #tpu.memory_space<vmem>>, vector<8x128xf32>
    tpu.vector_store %arg9[%c0_52, %c0_53], %152 {strides = array<i32>} : memref<8x128xf32, #tpu.memory_space<vmem>>, vector<8x128xf32>,
    return
  }
  func.func @transform_0(%arg0: i32) -> (i32, i32, i32) {
    %c0_i32 = arith.constant 0 : i32
    %c0_i32_0 = arith.constant 0 : i32
    %c0_i32_1 = arith.constant 0 : i32
    return %arg0, %c0_i32, %c0_i32_0 : i32, i32, i32
  }
  func.func @transform_1(%arg0: i32) -> (i32, i32) {
    %c0_i32 = arith.constant 0 : i32
    %c0_i32_0 = arith.constant 0 : i32
    %c0_i32_1 = arith.constant 0 : i32
    return %c0_i32, %c0_i32_0 : i32, i32
  }
  func.func @transform_2(%arg0: i32) -> (i32, i32) {
    %c0_i32 = arith.constant 0 : i32
    %c0_i32_0 = arith.constant 0 : i32
    %c0_i32_1 = arith.constant 0 : i32
    return %c0_i32, %c0_i32_0 : i32, i32
  }
  func.func @transform_3(%arg0: i32) -> (i32, i32) {
    %c0_i32 = arith.constant 0 : i32
    %c0_i32_0 = arith.constant 0 : i32
    %c0_i32_1 = arith.constant 0 : i32
    return %c0_i32, %c0_i32_0 : i32, i32
  }
  func.func @transform_4(%arg0: i32) -> (i32, i32) {
    %c0_i32 = arith.constant 0 : i32
    %c0_i32_0 = arith.constant 0 : i32
    %c0_i32_1 = arith.constant 0 : i32
    return %c0_i32, %c0_i32_0 : i32, i32
  }
  func.func @transform_5(%arg0: i32) -> (i32, i32) {
    %c0_i32 = arith.constant 0 : i32
    %c0_i32_0 = arith.constant 0 : i32
    %c0_i32_1 = arith.constant 0 : i32
    return %c0_i32, %c0_i32_0 : i32, i32
  }
  func.func @transform_6(%arg0: i32) -> (i32, i32) {
    %c0_i32 = arith.constant 0 : i32
    %c0_i32_0 = arith.constant 0 : i32
    %c0_i32_1 = arith.constant 0 : i32
    return %c0_i32, %c0_i32_0 : i32, i32
  }
  func.func @transform_7(%arg0: i32) -> (i32, i32, i32) {
    %c0_i32 = arith.constant 0 : i32
    %c0_i32_0 = arith.constant 0 : i32
    %c0_i32_1 = arith.constant 0 : i32
    return %arg0, %c0_i32, %c0_i32_0 : i32, i32, i32
  }
  func.func @transform_8(%arg0: i32) -> (i32, i32) {
    %c0_i32 = arith.constant 0 : i32
    %c0_i32_0 = arith.constant 0 : i32
    %c0_i32_1 = arith.constant 0 : i32
    return %c0_i32, %c0_i32_0 : i32, i32
  }
}

</mosaic_0001>

<llo_original>
// kernel: tpu_custom_call.1
$region0: #{tpu_custom_call.1}
  #allocation0 [shape = 'u32[]', space=smem, size = 0x4, offset = 0x4, fixed_abs, tag = 'smem constant byte address 0x4 - core index']
  #allocation1 [shape = 'u32[144,128]{1,0:T(1,128)}', space=vmem, size = 0x12000, scoped, tag = 'internal scratch']
  %s0 = inlined_call_operand.hbm [shape: f32[16,8,16], index: 0, kind: input, shape index: {}]
  %s1 = inlined_call_operand.hbm [shape: f32[8,128], index: 1, kind: input, shape index: {}]
  %s2 = inlined_call_operand.hbm [shape: f32[16,384], index: 2, kind: input, shape index: {}]
  %s3 = inlined_call_operand.hbm [shape: f32[128,256], index: 3, kind: input, shape index: {}]
  %s4 = inlined_call_operand.vmem [shape: f32[1,256], index: 4, kind: input, shape index: {}]
  %s5 = inlined_call_operand.hbm [shape: f32[128,128], index: 5, kind: input, shape index: {}]
  %s6 = inlined_call_operand.vmem [shape: f32[1,128], index: 6, kind: input, shape index: {}]
  %s7 = inlined_call_operand.hbm [shape: f32[16,8,128], index: 7, kind: output, shape index: {0}]
  %s8 = inlined_call_operand.hbm [shape: f32[8,128], index: 8, kind: output, shape index: {1}]
  %9 = xla_tuple %s7, %s8
  %s10 = sld [smem:[#allocation0]]
  $region93: #{tpu_custom_call.1} parent=0
    _
  %s12 = ssub.s32 1, %s10
  %s13 = scalar_select 0, %s12, %s10
  $region1: #{tpu_custom_call.1} parent=0
    #allocation2 [shape = 'u8[32768]{0}', space=vmem, size = 0x8000, scoped, tag = 'input window, operand 0']
    #allocation3 [shape = 's32[2]{0}', space=sflag, size = 0x8, scoped, tag = 'scoped memory for tpu_custom_call.1']
    #allocation4 [shape = 's32[2]{0}', space=sflag, size = 0x8, scoped, tag = 'scoped memory for tpu_custom_call.1']
    #allocation5 [shape = 'u8[4096]{0}', space=vmem, size = 0x1000, scoped, tag = 'input window, operand 1, single buffered']
    #allocation6 [shape = 's32[1]{0}', space=sflag, size = 0x4, scoped, tag = 'scoped memory for tpu_custom_call.1']
    #allocation7 [shape = 'u8[24576]{0}', space=vmem, size = 0x6000, scoped, tag = 'input window, operand 2, single buffered']
    #allocation8 [shape = 'u8[131072]{0}', space=vmem, size = 0x20000, scoped, tag = 'input window, operand 3, single buffered']
    #allocation9 [shape = 's32[1]{0}', space=sflag, size = 0x4, scoped, tag = 'scoped memory for tpu_custom_call.1']
    #allocation10 [shape = 'u8[65536]{0}', space=vmem, size = 0x10000, scoped, tag = 'input window, operand 5, single buffered']
    #allocation11 [shape = 'u8[32768]{0}', space=vmem, size = 0x8000, scoped, tag = 'output window, operand 0']
    #allocation12 [shape = 'u8[4096]{0}', space=vmem, size = 0x1000, scoped, tag = 'output window, operand 1, single buffered']
    #allocation13 [shape = 's32[1]{0}', space=sflag, size = 0x4, scoped, tag = 'scoped memory for tpu_custom_call.1']
    %14 = vsyncpa [#allocation3], 0
    %s15 = scalar_lea.sflag [#allocation3], 1
    %16 = vsyncpa %s15, 0
    %17 = vsyncpa [#allocation6], 0
    %18 = vsyncpa [#allocation9], 0
    %19 = vsyncpa [#allocation4], 0
    %s20 = scalar_lea.sflag [#allocation4], 1
    %21 = vsyncpa %s20, 0
    %22 = vsyncpa [#allocation13], 0
    loop: start=0, step=1, limit=6
    $region2: #{tpu_custom_call.1} parent=1 // loop_pre_header
      _
    $region3: #{tpu_custom_call.1} parent=1 // loop_header
      %s24 = sphi 0, %s28
      %p25 = scmp.ge.s32.totalorder %s24, 6
      %s34 = sphi 0, %s36
      %s37 = sphi 0, %s34
      %s38 = sphi 0, %s37
      %s54 = sphi 0, %s38
      %s58 = sphi 0, %s58
      %s60 = sphi 0, %s58
      %s61 = sphi 0, %s60
      %s75 = sphi 0, %s61
      %s79 = sphi 0, %s79
      %s81 = sphi 0, %s79
      %s82 = sphi 0, %s81
      %s96 = sphi 0, %s82
      %s100 = sphi 0, %s100
      %s102 = sphi 0, %s100
      %s103 = sphi 0, %s102
      %s117 = sphi 0, %s103
      %s121 = sphi 0, %s121
      %s123 = sphi 0, %s121
      %s124 = sphi 0, %s123
      %s138 = sphi 0, %s124
      %s142 = sphi 0, %s142
      %s144 = sphi 0, %s142
      %s145 = sphi 0, %s144
      %s159 = sphi 0, %s145
      %s163 = sphi 0, %s163
      %s165 = sphi 0, %s163
      %s166 = sphi 0, %s165
      %s180 = sphi 0, %s166
      %s186 = sphi 0, %s188
      %s189 = sphi 0, %s186
      %s190 = sphi 0, %s189
      %s206 = sphi 0, %s190
      %s210 = sphi 0, %s210
      %s212 = sphi 0, %s210
      %s213 = sphi 0, %s212
      %s227 = sphi 0, %s213
    $region4: #{tpu_custom_call.1} parent=1 // loop_header_branch
      %27 = sbr.rel (%p25) target = $region8
    $region5: #{tpu_custom_call.1} parent=1 // loop_body
      %s29 = ssub.s32 %s24, 1
      %s30 = ssub.s32 %s24, 2
      %s31 = sadd.s32 %s24, 1
      %s32 = ssub.s32 %s24, %s31
      %p33 = scmp.eq.s32.totalorder %s32, 0
      %s35 = sadd.s32 %s34, 1
      %s36 = scalar_select %p33, %s34, %s35
      %p39 = pneg %p33
      %p40 = scmp.eq.s32.totalorder %s24, 3
      %p41 = por %p39, %p40
      %p42 = scmp.ne.s32.totalorder %s34, %s37
      %p43 = scmp.eq.s32.totalorder %s24, 0
      %p44 = por %p42, %p43
      %p45 = scmp.ne.s32.totalorder %s34, %s37
      %p46 = scmp.eq.s32.totalorder %s29, 3
      %p47 = por %p45, %p46
      %p48 = scmp.ne.s32.totalorder %s37, %s38
      %p49 = scmp.eq.s32.totalorder %s29, 0
      %p50 = por %p48, %p49
      %p51 = scmp.ne.s32.totalorder %s37, %s38
      %p52 = scmp.eq.s32.totalorder %s30, 3
      %p53 = por %p51, %p52
      %p55 = scmp.ne.s32.totalorder %s38, %s54
      %p56 = scmp.eq.s32.totalorder %s30, 0
      %p57 = por %p55, %p56
      %s59 = sadd.s32 %s58, 1
      %p62 = scmp.eq.s32.totalorder %s24, 3
      %p63 = scmp.ne.s32.totalorder %s58, %s60
      %p64 = scmp.eq.s32.totalorder %s24, 0
      %p65 = por %p63, %p64
      %p66 = scmp.ne.s32.totalorder %s58, %s60
      %p67 = scmp.eq.s32.totalorder %s29, 3
      %p68 = por %p66, %p67
      %p69 = scmp.ne.s32.totalorder %s60, %s61
      %p70 = scmp.eq.s32.totalorder %s29, 0
      %p71 = por %p69, %p70
      %p72 = scmp.ne.s32.totalorder %s60, %s61
      %p73 = scmp.eq.s32.totalorder %s30, 3
      %p74 = por %p72, %p73
      %p76 = scmp.ne.s32.totalorder %s61, %s75
      %p77 = scmp.eq.s32.totalorder %s30, 0
      %p78 = por %p76, %p77
      %s80 = sadd.s32 %s79, 1
      %p83 = scmp.eq.s32.totalorder %s24, 3
      %p84 = scmp.ne.s32.totalorder %s79, %s81
      %p85 = scmp.eq.s32.totalorder %s24, 0
      %p86 = por %p84, %p85
      %p87 = scmp.ne.s32.totalorder %s79, %s81
      %p88 = scmp.eq.s32.totalorder %s29, 3
      %p89 = por %p87, %p88
      %p90 = scmp.ne.s32.totalorder %s81, %s82
      %p91 = scmp.eq.s32.totalorder %s29, 0
      %p92 = por %p90, %p91
      %p93 = scmp.ne.s32.totalorder %s81, %s82
      %p94 = scmp.eq.s32.totalorder %s30, 3
      %p95 = por %p93, %p94
      %p97 = scmp.ne.s32.totalorder %s82, %s96
      %p98 = scmp.eq.s32.totalorder %s30, 0
      %p99 = por %p97, %p98
      %s101 = sadd.s32 %s100, 1
      %p104 = scmp.eq.s32.totalorder %s24, 3
      %p105 = scmp.ne.s32.totalorder %s100, %s102
      %p106 = scmp.eq.s32.totalorder %s24, 0
      %p107 = por %p105, %p106
      %p108 = scmp.ne.s32.totalorder %s100, %s102
      %p109 = scmp.eq.s32.totalorder %s29, 3
      %p110 = por %p108, %p109
      %p111 = scmp.ne.s32.totalorder %s102, %s103
      %p112 = scmp.eq.s32.totalorder %s29, 0
      %p113 = por %p111, %p112
      %p114 = scmp.ne.s32.totalorder %s102, %s103
      %p115 = scmp.eq.s32.totalorder %s30, 3
      %p116 = por %p114, %p115
      %p118 = scmp.ne.s32.totalorder %s103, %s117
      %p119 = scmp.eq.s32.totalorder %s30, 0
      %p120 = por %p118, %p119
      %s122 = sadd.s32 %s121, 1
      %p125 = scmp.eq.s32.totalorder %s24, 3
      %p126 = scmp.ne.s32.totalorder %s121, %s123
      %p127 = scmp.eq.s32.totalorder %s24, 0
      %p128 = por %p126, %p127
      %p129 = scmp.ne.s32.totalorder %s121, %s123
      %p130 = scmp.eq.s32.totalorder %s29, 3
      %p131 = por %p129, %p130
      %p132 = scmp.ne.s32.totalorder %s123, %s124
      %p133 = scmp.eq.s32.totalorder %s29, 0
      %p134 = por %p132, %p133
      %p135 = scmp.ne.s32.totalorder %s123, %s124
      %p136 = scmp.eq.s32.totalorder %s30, 3
      %p137 = por %p135, %p136
      %p139 = scmp.ne.s32.totalorder %s124, %s138
      %p140 = scmp.eq.s32.totalorder %s30, 0
      %p141 = por %p139, %p140
      %s143 = sadd.s32 %s142, 1
      %p146 = scmp.eq.s32.totalorder %s24, 3
      %p147 = scmp.ne.s32.totalorder %s142, %s144
      %p148 = scmp.eq.s32.totalorder %s24, 0
      %p149 = por %p147, %p148
      %p150 = scmp.ne.s32.totalorder %s142, %s144
      %p151 = scmp.eq.s32.totalorder %s29, 3
      %p152 = por %p150, %p151
      %p153 = scmp.ne.s32.totalorder %s144, %s145
      %p154 = scmp.eq.s32.totalorder %s29, 0
      %p155 = por %p153, %p154
      %p156 = scmp.ne.s32.totalorder %s144, %s145
      %p157 = scmp.eq.s32.totalorder %s30, 3
      %p158 = por %p156, %p157
      %p160 = scmp.ne.s32.totalorder %s145, %s159
      %p161 = scmp.eq.s32.totalorder %s30, 0
      %p162 = por %p160, %p161
      %s164 = sadd.s32 %s163, 1
      %p167 = scmp.eq.s32.totalorder %s24, 3
      %p168 = scmp.ne.s32.totalorder %s163, %s165
      %p169 = scmp.eq.s32.totalorder %s24, 0
      %p170 = por %p168, %p169
      %p171 = scmp.ne.s32.totalorder %s163, %s165
      %p172 = scmp.eq.s32.totalorder %s29, 3
      %p173 = por %p171, %p172
      %p174 = scmp.ne.s32.totalorder %s165, %s166
      %p175 = scmp.eq.s32.totalorder %s29, 0
      %p176 = por %p174, %p175
      %p177 = scmp.ne.s32.totalorder %s165, %s166
      %p178 = scmp.eq.s32.totalorder %s30, 3
      %p179 = por %p177, %p178
      %p181 = scmp.ne.s32.totalorder %s166, %s180
      %p182 = scmp.eq.s32.totalorder %s30, 0
      %p183 = por %p181, %p182
      %s184 = ssub.s32 %s24, %s31
      %p185 = scmp.eq.s32.totalorder %s184, 0
      %s187 = sadd.s32 %s186, 1
      %s188 = scalar_select %p185, %s186, %s187
      %p191 = pneg %p185
      %p192 = scmp.eq.s32.totalorder %s24, 3
      %p193 = por %p191, %p192
      %p194 = scmp.ne.s32.totalorder %s186, %s189
      %p195 = scmp.eq.s32.totalorder %s24, 0
      %p196 = por %p194, %p195
      %p197 = scmp.ne.s32.totalorder %s186, %s189
      %p198 = scmp.eq.s32.totalorder %s29, 3
      %p199 = por %p197, %p198
      %p200 = scmp.ne.s32.totalorder %s189, %s190
      %p201 = scmp.eq.s32.totalorder %s29, 0
      %p202 = por %p200, %p201
      %p203 = scmp.ne.s32.totalorder %s189, %s190
      %p204 = scmp.eq.s32.totalorder %s30, 3
      %p205 = por %p203, %p204
      %p207 = scmp.ne.s32.totalorder %s190, %s206
      %p208 = scmp.eq.s32.totalorder %s30, 0
      %p209 = por %p207, %p208
      %s211 = sadd.s32 %s210, 1
      %p214 = scmp.eq.s32.totalorder %s24, 3
      %p215 = scmp.ne.s32.totalorder %s210, %s212
      %p216 = scmp.eq.s32.totalorder %s24, 0
      %p217 = por %p215, %p216
      %p218 = scmp.ne.s32.totalorder %s210, %s212
      %p219 = scmp.eq.s32.totalorder %s29, 3
      %p220 = por %p218, %p219
      %p221 = scmp.ne.s32.totalorder %s212, %s213
      %p222 = scmp.eq.s32.totalorder %s29, 0
      %p223 = por %p221, %p222
      %p224 = scmp.ne.s32.totalorder %s212, %s213
      %p225 = scmp.eq.s32.totalorder %s30, 3
      %p226 = por %p224, %p225
      %p228 = scmp.ne.s32.totalorder %s213, %s227
      %p229 = scmp.eq.s32.totalorder %s30, 0
      %p230 = por %p228, %p229
      %p231 = scmp.le.s32.totalorder 1, %s24
      %p232 = scmp.lt.s32.totalorder %s24, 5
      %p233 = pnand %p231, %p232
      %p234 = pneg %p233
      // Predicated region
      $region9: #{tpu_custom_call.1} parent=5 // pred_check
        _
      $region10: #{tpu_custom_call.1} parent=5 // pred_check_branch
        %236 = sbr.rel (%p233) target = $region12
      $region11: #{tpu_custom_call.1} parent=5 // pred_region
        %s237 = ssub.s32 %s24, 1
        // Predicated region
        $region13: #{tpu_custom_call.1} parent=11 // pred_check
          %p238 = pneg %p71
        $region14: #{tpu_custom_call.1} parent=11 // pred_check_branch
          %240 = sbr.rel (%p238) target = $region16
        $region15: #{tpu_custom_call.1} parent=11 // pred_region
          %s242 = ssub.s32 128, 128
          %243 = vsyncadd [#allocation6], %s242
          %s245 = sshll.u32 [#allocation5], 4
          %s246 = int_to_ptr.vmem [resolvable:$true] %s245
          %248 = dma.hbm_to_vmem [thread:$0]  %s1, 128, %s246, [#allocation6]
        $region16: #{tpu_custom_call.1} parent=11 // pred_fallthru
          _
        // Predicated region
        $region17: #{tpu_custom_call.1} parent=11 // pred_check
          %p249 = pneg %p92
        $region18: #{tpu_custom_call.1} parent=11 // pred_check_branch
          %251 = sbr.rel (%p249) target = $region20
        $region19: #{tpu_custom_call.1} parent=11 // pred_region
          %s253 = ssub.s32 768, 768
          %254 = vsyncadd [#allocation6], %s253
          %s255 = sshll.u32 [#allocation7], 4
          %s256 = int_to_ptr.vmem [resolvable:$true] %s255
          %261 = dma.hbm_to_vmem [thread:$0]  %s2, 768, %s256, [#allocation6], 384, 384, 24
        $region20: #{tpu_custom_call.1} parent=11 // pred_fallthru
          _
        // Predicated region
        $region21: #{tpu_custom_call.1} parent=11 // pred_check
          %p262 = pneg %p113
        $region22: #{tpu_custom_call.1} parent=11 // pred_check_branch
          %264 = sbr.rel (%p262) target = $region24
        $region23: #{tpu_custom_call.1} parent=11 // pred_region
          %s266 = ssub.s32 4096, 4096
          %267 = vsyncadd [#allocation9], %s266
          %s268 = sshll.u32 [#allocation8], 4
          %s269 = int_to_ptr.vmem [resolvable:$true] %s268
          %274 = dma.hbm_to_vmem [thread:$0]  %s3, 4096, %s269, [#allocation9], 256, 256, 16
        $region24: #{tpu_custom_call.1} parent=11 // pred_fallthru
          _
        // Predicated region
        $region25: #{tpu_custom_call.1} parent=11 // pred_check
          %p275 = pneg %p134
        $region26: #{tpu_custom_call.1} parent=11 // pred_check_branch
          %277 = sbr.rel (%p275) target = $region28
        $region27: #{tpu_custom_call.1} parent=11 // pred_region
          _
        $region28: #{tpu_custom_call.1} parent=11 // pred_fallthru
          _
        // Predicated region
        $region29: #{tpu_custom_call.1} parent=11 // pred_check
          %p278 = pneg %p155
        $region30: #{tpu_custom_call.1} parent=11 // pred_check_branch
          %280 = sbr.rel (%p278) target = $region32
        $region31: #{tpu_custom_call.1} parent=11 // pred_region
          %s282 = ssub.s32 2048, 2048
          %283 = vsyncadd [#allocation9], %s282
          %s284 = sshll.u32 [#allocation10], 4
          %s285 = int_to_ptr.vmem [resolvable:$true] %s284
          %290 = dma.hbm_to_vmem [thread:$0]  %s5, 2048, %s285, [#allocation9], 128, 128, 8
        $region32: #{tpu_custom_call.1} parent=11 // pred_fallthru
          _
        // Predicated region
        $region33: #{tpu_custom_call.1} parent=11 // pred_check
          %p291 = pneg %p176
        $region34: #{tpu_custom_call.1} parent=11 // pred_check_branch
          %293 = sbr.rel (%p291) target = $region36
        $region35: #{tpu_custom_call.1} parent=11 // pred_region
          _
        $region36: #{tpu_custom_call.1} parent=11 // pred_fallthru
          _
      $region12: #{tpu_custom_call.1} parent=5 // pred_fallthru
        _
      %p294 = scmp.lt.s32.totalorder %s24, 4
      // Predicated region
      $region37: #{tpu_custom_call.1} parent=5 // pred_check
        %p295 = pneg %p294
      $region38: #{tpu_custom_call.1} parent=5 // pred_check_branch
        %297 = sbr.rel (%p295) target = $region40
      $region39: #{tpu_custom_call.1} parent=5 // pred_region
        // Predicated region
        $region41: #{tpu_custom_call.1} parent=39 // pred_check
          %p298 = pneg %p44
        $region42: #{tpu_custom_call.1} parent=39 // pred_check_branch
          %300 = sbr.rel (%p298) target = $region44
        $region43: #{tpu_custom_call.1} parent=39 // pred_region
          %s301 = sand.u32 %s34, 1
          %s302 = scalar_lea.sflag [#allocation3], %s301
          %s303 = sand.u32 %s34, 1
          %s304 = smul.addr %s303, 32
          %s305 = scalar_lea.vmem [#allocation2], %s304
          %s306 = smul.u32 4, %s24
          %s308 = ssub.s32 512, 512
          %309 = vsyncadd %s302, %s308
          %s310 = smul.addr %s306, 128
          %s311 = scalar_lea.hbm %s0, %s310
          %s312 = sshll.u32 %s305, 4
          %s313 = int_to_ptr.vmem [resolvable:$true] %s312
          %318 = dma.hbm_to_vmem [thread:$0]  %s311, 512, %s313, %s302, 128, 128, 8
        $region44: #{tpu_custom_call.1} parent=39 // pred_fallthru
          _
      $region40: #{tpu_custom_call.1} parent=5 // pred_fallthru
        _
      %p319 = scmp.le.s32.totalorder 1, %s24
      %p320 = scmp.lt.s32.totalorder %s24, 5
      %p321 = pnand %p319, %p320
      %p322 = pneg %p321
      // Predicated region
      $region45: #{tpu_custom_call.1} parent=5 // pred_check
        _
      $region46: #{tpu_custom_call.1} parent=5 // pred_check_branch
        %324 = sbr.rel (%p321) target = $region48
      $region47: #{tpu_custom_call.1} parent=5 // pred_region
        %s325 = ssub.s32 %s24, 1
        %s326 = sand.u32 %s37, 1
        %s327 = scalar_lea.sflag [#allocation3], %s326
        %s328 = sand.u32 %s37, 1
        %s329 = smul.addr %s328, 32
        %s330 = scalar_lea.vmem [#allocation2], %s329
        // Predicated region
        $region49: #{tpu_custom_call.1} parent=47 // pred_check
          %p331 = pneg %p50
        $region50: #{tpu_custom_call.1} parent=47 // pred_check_branch
          %333 = sbr.rel (%p331) target = $region52
        $region51: #{tpu_custom_call.1} parent=47 // pred_region
          %334 = dma.done %s327, 512
        $region52: #{tpu_custom_call.1} parent=47 // pred_fallthru
          _
        // Predicated region
        $region53: #{tpu_custom_call.1} parent=47 // pred_check
          %p335 = pneg %p71
        $region54: #{tpu_custom_call.1} parent=47 // pred_check_branch
          %337 = sbr.rel (%p335) target = $region56
        $region55: #{tpu_custom_call.1} parent=47 // pred_region
          %338 = dma.done [#allocation6], 128
        $region56: #{tpu_custom_call.1} parent=47 // pred_fallthru
          _
        // Predicated region
        $region57: #{tpu_custom_call.1} parent=47 // pred_check
          %p339 = pneg %p92
        $region58: #{tpu_custom_call.1} parent=47 // pred_check_branch
          %341 = sbr.rel (%p339) target = $region60
        $region59: #{tpu_custom_call.1} parent=47 // pred_region
          %342 = dma.done [#allocation6], 768
        $region60: #{tpu_custom_call.1} parent=47 // pred_fallthru
          _
        // Predicated region
        $region61: #{tpu_custom_call.1} parent=47 // pred_check
          %p343 = pneg %p113
        $region62: #{tpu_custom_call.1} parent=47 // pred_check_branch
          %345 = sbr.rel (%p343) target = $region64
        $region63: #{tpu_custom_call.1} parent=47 // pred_region
          %346 = dma.done [#allocation9], 4096
        $region64: #{tpu_custom_call.1} parent=47 // pred_fallthru
          _
        // Predicated region
        $region65: #{tpu_custom_call.1} parent=47 // pred_check
          %p347 = pneg %p155
        $region66: #{tpu_custom_call.1} parent=47 // pred_check_branch
          %349 = sbr.rel (%p347) target = $region68
        $region67: #{tpu_custom_call.1} parent=47 // pred_region
          %350 = dma.done [#allocation9], 2048
        $region68: #{tpu_custom_call.1} parent=47 // pred_fallthru
          _
        %s351 = sand.u32 %s37, 1
        %s352 = scalar_lea.sflag [#allocation3], %s351
        %s353 = sand.u32 %s37, 1
        %s354 = smul.addr %s353, 32
        %s355 = scalar_lea.vmem [#allocation2], %s354
        %p356 = pneg %p50
        %p357 = pneg %p47
        %p358 = pneg %p71
        %p359 = pneg %p68
        %p360 = pneg %p92
        %p361 = pneg %p89
        %p362 = pneg %p113
        %p363 = pneg %p110
        %p364 = pneg %p134
        %p365 = pneg %p131
        %p366 = pneg %p155
        %p367 = pneg %p152
        %p368 = pneg %p176
        %p369 = pneg %p173
        %p370 = pneg %p202
        %p371 = pneg %p199
        %s372 = sand.u32 %s189, 1
        %s373 = scalar_lea.sflag [#allocation4], %s372
        %s374 = sand.u32 %s189, 1
        %s375 = smul.addr %s374, 32
        %s376 = scalar_lea.vmem [#allocation11], %s375
        %p377 = pneg %p223
        %p378 = pneg %p220
        %s379 = smul.u32 4, %s29
        %s380 = smul.u32 4, %s29
        %p381 = scmp.eq.s32.totalorder %s29, 0
        // Predicated region
        $region69: #{tpu_custom_call.1} parent=47 // pred_check
          %p382 = pneg %p381
        $region70: #{tpu_custom_call.1} parent=47 // pred_check_branch
          %384 = sbr.rel (%p382) target = $region72
        $region71: #{tpu_custom_call.1} parent=47 // pred_region
          %v385 = vld [vmem:[#allocation5] sm:$0xff]
          %386 = vst [vmem:[#allocation12] sm:$0xff] %v385
        $region72: #{tpu_custom_call.1} parent=47 // pred_fallthru
          _
        %v387 = vld [vmem:[#allocation7] sm:$0xff]
        %v388 = vld [vmem:[#allocation7 + $0x8] sm:$0xff]
        %v389 = vld [vmem:[#allocation7 + $0x10] sm:$0xff]
        %v390 = vld [vmem:[#allocation7 + $0x18] sm:$0xff]
        %v391 = vld [vmem:[#allocation7 + $0x20] sm:$0xff]
        %v392 = vld [vmem:[#allocation7 + $0x28] sm:$0xff]
        %v393 = vld [vmem:[#allocation8] sm:$0xff]
        %v394 = vld [vmem:[#allocation8 + $0x8] sm:$0xff]
        %v395 = vld [vmem:[#allocation8 + $0x10] sm:$0xff]
        %v396 = vld [vmem:[#allocation8 + $0x18] sm:$0xff]
        %v397 = vld [vmem:[#allocation8 + $0x20] sm:$0xff]
        %v398 = vld [vmem:[#allocation8 + $0x28] sm:$0xff]
        %v399 = vld [vmem:[#allocation8 + $0x30] sm:$0xff]
        %v400 = vld [vmem:[#allocation8 + $0x38] sm:$0xff]
        %v401 = vld [vmem:[#allocation8 + $0x40] sm:$0xff]
        %v402 = vld [vmem:[#allocation8 + $0x48] sm:$0xff]
        %v403 = vld [vmem:[#allocation8 + $0x50] sm:$0xff]
        %v404 = vld [vmem:[#allocation8 + $0x58] sm:$0xff]
        %v405 = vld [vmem:[#allocation8 + $0x60] sm:$0xff]
        %v406 = vld [vmem:[#allocation8 + $0x68] sm:$0xff]
        %v407 = vld [vmem:[#allocation8 + $0x70] sm:$0xff]
        %v408 = vld [vmem:[#allocation8 + $0x78] sm:$0xff]
        %v409 = vld [vmem:[#allocation8 + $0x80] sm:$0xff]
        %v410 = vld [vmem:[#allocation8 + $0x88] sm:$0xff]
        %v411 = vld [vmem:[#allocation8 + $0x90] sm:$0xff]
        %v412 = vld [vmem:[#allocation8 + $0x98] sm:$0xff]
        %v413 = vld [vmem:[#allocation8 + $0xa0] sm:$0xff]
        %v414 = vld [vmem:[#allocation8 + $0xa8] sm:$0xff]
        %v415 = vld [vmem:[#allocation8 + $0xb0] sm:$0xff]
        %v416 = vld [vmem:[#allocation8 + $0xb8] sm:$0xff]
        %v417 = vld [vmem:[#allocation8 + $0xc0] sm:$0xff]
        %v418 = vld [vmem:[#allocation8 + $0xc8] sm:$0xff]
        %v419 = vld [vmem:[#allocation8 + $0xd0] sm:$0xff]
        %v420 = vld [vmem:[#allocation8 + $0xd8] sm:$0xff]
        %v421 = vld [vmem:[#allocation8 + $0xe0] sm:$0xff]
        %v422 = vld [vmem:[#allocation8 + $0xe8] sm:$0xff]
        %v423 = vld [vmem:[#allocation8 + $0xf0] sm:$0xff]
        %v424 = vld [vmem:[#allocation8 + $0xf8] sm:$0xff]
        %v425 = vld [vmem:[#allocation10] sm:$0xff]
        %v426 = vld [vmem:[#allocation10 + $0x8] sm:$0xff]
        %v427 = vld [vmem:[#allocation10 + $0x10] sm:$0xff]
        %v428 = vld [vmem:[#allocation10 + $0x18] sm:$0xff]
        %v429 = vld [vmem:[#allocation10 + $0x20] sm:$0xff]
        %v430 = vld [vmem:[#allocation10 + $0x28] sm:$0xff]
        %v431 = vld [vmem:[#allocation10 + $0x30] sm:$0xff]
        %v432 = vld [vmem:[#allocation10 + $0x38] sm:$0xff]
        %v433 = vld [vmem:[#allocation10 + $0x40] sm:$0xff]
        %v434 = vld [vmem:[#allocation10 + $0x48] sm:$0xff]
        %v435 = vld [vmem:[#allocation10 + $0x50] sm:$0xff]
        %v436 = vld [vmem:[#allocation10 + $0x58] sm:$0xff]
        %v437 = vld [vmem:[#allocation10 + $0x60] sm:$0xff]
        %v438 = vld [vmem:[#allocation10 + $0x68] sm:$0xff]
        %v439 = vld [vmem:[#allocation10 + $0x70] sm:$0xff]
        %v440 = vld [vmem:[#allocation10 + $0x78] sm:$0xff]
        %v441 = vld [vmem:[%s4] sm:$0x3]
        %v442 = vld [vmem:[%s6] sm:$0x1]
        %v443 = vld [vmem:[#allocation12] sm:$0xff]
        %v444 = vld [vmem:[%s330] sm:$0xff]
        %vm445 = vcmask 130048
        %v447 = vsel %vm445, %v444, 0
        %449 = vmatprep.subr.mxu0 %v388
        %450 = vmatpush1.msra.mxu0 %v387
        %451 = vmatprep.subr.mxu0 %v391
        %452 = vmatpush1.msra.mxu0 %v390
        %453 = vmatprep.subr.mxu0 0.0
        %454 = vmatpush1.msra.mxu0 0.0
        %455 = vmatprep.subr.mxu0 0.0
        %456 = vmatpush1.msra.mxu0 0.0
        %457 = vmatprep.subr.mxu0 0.0
        %458 = vmatpush1.msra.mxu0 0.0
        %459 = vmatprep.subr.mxu0 0.0
        %460 = vmatpush1.msra.mxu0 0.0
        %461 = vmatprep.subr.mxu0 0.0
        %462 = vmatpush1.msra.mxu0 0.0
        %463 = vmatprep.subr.mxu0 0.0
        %464 = vmatpush1.msra.mxu0 0.0
        %465 = vmatprep.subr.mxu0 0.0
        %466 = vmatpush1.msra.mxu0 0.0
        %467 = vmatprep.subr.mxu0 0.0
        %468 = vmatpush1.msra.mxu0 0.0
        %469 = vmatprep.subr.mxu0 0.0
        %470 = vmatpush1.msra.mxu0 0.0
        %471 = vmatprep.subr.mxu0 0.0
        %472 = vmatpush1.msra.mxu0 0.0
        %473 = vmatprep.subr.mxu0 0.0
        %474 = vmatpush1.msra.mxu0 0.0
        %475 = vmatprep.subr.mxu0 0.0
        %476 = vmatpush1.msra.mxu0 0.0
        %477 = vmatprep.subr.mxu0 0.0
        %478 = vmatpush1.msra.mxu0 0.0
        %479 = vmatprep.subr.mxu0 0.0
        %480 = vmatpush1.msra.mxu0 0.0
        %481 = vmatprep.subr.mxu0 0.0
        %482 = vmatpush1.msra.mxu0 0.0
        %483 = vmatprep.subr.mxu0 0.0
        %484 = vmatpush1.msra.mxu0 0.0
        %485 = vmatprep.subr.mxu0 0.0
        %486 = vmatpush1.msra.mxu0 0.0
        %487 = vmatprep.subr.mxu0 0.0
        %488 = vmatpush1.msra.mxu0 0.0
        %489 = vmatprep.subr.mxu0 0.0
        %490 = vmatpush1.msra.mxu0 0.0
        %491 = vmatprep.subr.mxu0 0.0
        %492 = vmatpush1.msra.mxu0 0.0
        %493 = vmatprep.subr.mxu0 0.0
        %494 = vmatpush1.msra.mxu0 0.0
        %495 = vmatprep.subr.mxu0 0.0
        %496 = vmatpush1.msra.mxu0 0.0
        %497 = vmatprep.subr.mxu0 0.0
        %498 = vmatpush1.msra.mxu0 0.0
        %499 = vmatprep.subr.mxu0 0.0
        %500 = vmatpush1.msra.mxu0 0.0
        %501 = vmatprep.subr.mxu0 0.0
        %502 = vmatpush1.msra.mxu0 0.0
        %503 = vmatprep.subr.mxu0 0.0
        %504 = vmatpush1.msra.mxu0 0.0
        %505 = vmatprep.subr.mxu0 0.0
        %506 = vmatpush1.msra.mxu0 0.0
        %507 = vmatprep.subr.mxu0 0.0
        %508 = vmatpush1.msra.mxu0 0.0
        %509 = vmatprep.subr.mxu0 0.0
        %510 = vmatpush1.msra.mxu0 0.0
        %511 = vmatprep.subr.mxu0 0.0
        %512 = vmatpush1.msra.mxu0 0.0
        %513 = vmatprep.mubr.f32.mxu0 0.0
        %514 = vmatmul.mubr.f32.gmra.mrb[0].mxu0 %v447
        %v515 = vpop.f32.mrb[0].mxu0
        %v516 = vadd.f32 0.0, %v515
        %v517 = vpop.f32.mrb[0].mxu0
        %v518 = vadd.f32 0.0, %v517
        %519 = vdwg.mxu0
        %520 = vmatprep.subr.mxu0 0.0
        %521 = vmatpush1.msra.mxu0 %v389
        %522 = vmatprep.subr.mxu0 0.0
        %523 = vmatpush1.msra.mxu0 %v392
        %524 = vmatprep.subr.mxu0 0.0
        %525 = vmatpush1.msra.mxu0 0.0
        %526 = vmatprep.subr.mxu0 0.0
        %527 = vmatpush1.msra.mxu0 0.0
        %528 = vmatprep.subr.mxu0 0.0
        %529 = vmatpush1.msra.mxu0 0.0
        %530 = vmatprep.subr.mxu0 0.0
        %531 = vmatpush1.msra.mxu0 0.0
        %532 = vmatprep.subr.mxu0 0.0
        %533 = vmatpush1.msra.mxu0 0.0
        %534 = vmatprep.subr.mxu0 0.0
        %535 = vmatpush1.msra.mxu0 0.0
        %536 = vmatprep.subr.mxu0 0.0
        %537 = vmatpush1.msra.mxu0 0.0
        %538 = vmatprep.subr.mxu0 0.0
        %539 = vmatpush1.msra.mxu0 0.0
        %540 = vmatprep.subr.mxu0 0.0
        %541 = vmatpush1.msra.mxu0 0.0
        %542 = vmatprep.subr.mxu0 0.0
        %543 = vmatpush1.msra.mxu0 0.0
        %544 = vmatprep.subr.mxu0 0.0
        %545 = vmatpush1.msra.mxu0 0.0
        %546 = vmatprep.subr.mxu0 0.0
        %547 = vmatpush1.msra.mxu0 0.0
        %548 = vmatprep.subr.mxu0 0.0
        %549 = vmatpush1.msra.mxu0 0.0
        %550 = vmatprep.subr.mxu0 0.0
        %551 = vmatpush1.msra.mxu0 0.0
        %552 = vmatprep.subr.mxu0 0.0
        %553 = vmatpush1.msra.mxu0 0.0
        %554 = vmatprep.subr.mxu0 0.0
        %555 = vmatpush1.msra.mxu0 0.0
        %556 = vmatprep.subr.mxu0 0.0
        %557 = vmatpush1.msra.mxu0 0.0
        %558 = vmatprep.subr.mxu0 0.0
        %559 = vmatpush1.msra.mxu0 0.0
        %560 = vmatprep.subr.mxu0 0.0
        %561 = vmatpush1.msra.mxu0 0.0
        %562 = vmatprep.subr.mxu0 0.0
        %563 = vmatpush1.msra.mxu0 0.0
        %564 = vmatprep.subr.mxu0 0.0
        %565 = vmatpush1.msra.mxu0 0.0
        %566 = vmatprep.subr.mxu0 0.0
        %567 = vmatpush1.msra.mxu0 0.0
        %568 = vmatprep.subr.mxu0 0.0
        %569 = vmatpush1.msra.mxu0 0.0
        %570 = vmatprep.subr.mxu0 0.0
        %571 = vmatpush1.msra.mxu0 0.0
        %572 = vmatprep.subr.mxu0 0.0
        %573 = vmatpush1.msra.mxu0 0.0
        %574 = vmatprep.subr.mxu0 0.0
        %575 = vmatpush1.msra.mxu0 0.0
        %576 = vmatprep.subr.mxu0 0.0
        %577 = vmatpush1.msra.mxu0 0.0
        %578 = vmatprep.subr.mxu0 0.0
        %579 = vmatpush1.msra.mxu0 0.0
        %580 = vmatprep.subr.mxu0 0.0
        %581 = vmatpush1.msra.mxu0 0.0
        %582 = vmatprep.subr.mxu0 0.0
        %583 = vmatpush1.msra.mxu0 0.0
        %584 = vmatprep.mubr.f32.mxu0 0.0
        %585 = vmatmul.mubr.f32.gmra.mrb[0].mxu0 %v447
        %v586 = vpop.f32.mrb[0].mxu0
        %v587 = vadd.f32 0.0, %v586
        %v588 = vpop.f32.mrb[0].mxu0
        %589 = vdwg.mxu0
        %590 = vmatprep.subr.mxu0 %v394
        %591 = vmatpush1.msra.mxu0 %v393
        %592 = vmatprep.subr.mxu0 %v396
        %593 = vmatpush1.msra.mxu0 %v395
        %594 = vmatprep.subr.mxu0 %v398
        %595 = vmatpush1.msra.mxu0 %v397
        %596 = vmatprep.subr.mxu0 %v400
        %597 = vmatpush1.msra.mxu0 %v399
        %598 = vmatprep.subr.mxu0 %v402
        %599 = vmatpush1.msra.mxu0 %v401
        %600 = vmatprep.subr.mxu0 %v404
        %601 = vmatpush1.msra.mxu0 %v403
        %602 = vmatprep.subr.mxu0 %v406
        %603 = vmatpush1.msra.mxu0 %v405
        %604 = vmatprep.subr.mxu0 %v408
        %605 = vmatpush1.msra.mxu0 %v407
        %606 = vmatprep.subr.mxu0 %v410
        %607 = vmatpush1.msra.mxu0 %v409
        %608 = vmatprep.subr.mxu0 %v412
        %609 = vmatpush1.msra.mxu0 %v411
        %610 = vmatprep.subr.mxu0 %v414
        %611 = vmatpush1.msra.mxu0 %v413
        %612 = vmatprep.subr.mxu0 %v416
        %613 = vmatpush1.msra.mxu0 %v415
        %614 = vmatprep.subr.mxu0 %v418
        %615 = vmatpush1.msra.mxu0 %v417
        %616 = vmatprep.subr.mxu0 %v420
        %617 = vmatpush1.msra.mxu0 %v419
        %618 = vmatprep.subr.mxu0 %v422
        %619 = vmatpush1.msra.mxu0 %v421
        %620 = vmatprep.subr.mxu0 %v424
        %621 = vmatpush1.msra.mxu0 %v423
        %622 = vmatprep.subr.mxu0 0.0
        %623 = vmatpush1.msra.mxu0 0.0
        %624 = vmatprep.subr.mxu0 0.0
        %625 = vmatpush1.msra.mxu0 0.0
        %626 = vmatprep.subr.mxu0 0.0
        %627 = vmatpush1.msra.mxu0 0.0
        %628 = vmatprep.subr.mxu0 0.0
        %629 = vmatpush1.msra.mxu0 0.0
        %630 = vmatprep.subr.mxu0 0.0
        %631 = vmatpush1.msra.mxu0 0.0
        %632 = vmatprep.subr.mxu0 0.0
        %633 = vmatpush1.msra.mxu0 0.0
        %634 = vmatprep.subr.mxu0 0.0
        %635 = vmatpush1.msra.mxu0 0.0
        %636 = vmatprep.subr.mxu0 0.0
        %637 = vmatpush1.msra.mxu0 0.0
        %638 = vmatprep.subr.mxu0 0.0
        %639 = vmatpush1.msra.mxu0 0.0
        %640 = vmatprep.subr.mxu0 0.0
        %641 = vmatpush1.msra.mxu0 0.0
        %642 = vmatprep.subr.mxu0 0.0
        %643 = vmatpush1.msra.mxu0 0.0
        %644 = vmatprep.subr.mxu0 0.0
        %645 = vmatpush1.msra.mxu0 0.0
        %646 = vmatprep.subr.mxu0 0.0
        %647 = vmatpush1.msra.mxu0 0.0
        %648 = vmatprep.subr.mxu0 0.0
        %649 = vmatpush1.msra.mxu0 0.0
        %650 = vmatprep.subr.mxu0 0.0
        %651 = vmatpush1.msra.mxu0 0.0
        %652 = vmatprep.subr.mxu0 0.0
        %653 = vmatpush1.msra.mxu0 0.0
        %654 = vmatprep.mubr.f32.mxu0 0.0
        %655 = vmatmul.mubr.f32.gmra.mrb[0].mxu0 %v443
        %v656 = vpop.f32.mrb[0].mxu0
        %v657 = vadd.f32 0.0, %v656
        %v658 = vpop.f32.mrb[0].mxu0
        %v659 = vadd.f32 0.0, %v658
        %660 = vdwg.mxu0
        %v661 = vadd.f32 %v516, %v657
        %v662 = vadd.f32 %v518, %v659
        %v664 = vlaneseq
        %v665 = vshrl.u32 %v664, 7
        %v666 = vsub.s32 0, %v665
        %v667 = vrot.slane %v441, %v666
        %v668 = vlaneseq
        %v669 = vshrl.u32 %v668, 7
        %v670 = vsub.s32 1, %v669
        %v671 = vrot.slane %v441, %v670
        %v674 = vadd.f32 %v661, %v667
        %v675 = vadd.f32 %v662, %v671
        %v676 = vxor.u32 %v674, 2147483648
        %v677 = vmul.f32 %v676, 1.442695
        %v678 = vpow.pop %v677
        %v679 = vadd.f32 %v678, 1.0
        %v680 = vrcp.pop %v679
        %v681 = vmul.f32 1.0, %v680
        %v682 = vxor.u32 %v675, 2147483648
        %v683 = vmul.f32 %v682, 1.442695
        %v684 = vpow.pop %v683
        %v685 = vadd.f32 %v684, 1.0
        %v686 = vrcp.pop %v685
        %v687 = vmul.f32 1.0, %v686
        %v689 = vlaneseq
        %v690 = vshrl.u32 %v689, 7
        %v691 = vsub.s32 0, %v690
        %v692 = vrot.slane %v442, %v691
        %v694 = vadd.f32 %v587, %v692
        %v695 = vmul.f32 %v687, %v443
        %696 = vmatprep.subr.mxu0 0.0
        %697 = vmatpush1.msra.mxu0 %v425
        %698 = vmatprep.subr.mxu0 0.0
        %699 = vmatpush1.msra.mxu0 %v426
        %700 = vmatprep.subr.mxu0 0.0
        %701 = vmatpush1.msra.mxu0 %v427
        %702 = vmatprep.subr.mxu0 0.0
        %703 = vmatpush1.msra.mxu0 %v428
        %704 = vmatprep.subr.mxu0 0.0
        %705 = vmatpush1.msra.mxu0 %v429
        %706 = vmatprep.subr.mxu0 0.0
        %707 = vmatpush1.msra.mxu0 %v430
        %708 = vmatprep.subr.mxu0 0.0
        %709 = vmatpush1.msra.mxu0 %v431
        %710 = vmatprep.subr.mxu0 0.0
        %711 = vmatpush1.msra.mxu0 %v432
        %712 = vmatprep.subr.mxu0 0.0
        %713 = vmatpush1.msra.mxu0 %v433
        %714 = vmatprep.subr.mxu0 0.0
        %715 = vmatpush1.msra.mxu0 %v434
        %716 = vmatprep.subr.mxu0 0.0
        %717 = vmatpush1.msra.mxu0 %v435
        %718 = vmatprep.subr.mxu0 0.0
        %719 = vmatpush1.msra.mxu0 %v436
        %720 = vmatprep.subr.mxu0 0.0
        %721 = vmatpush1.msra.mxu0 %v437
        %722 = vmatprep.subr.mxu0 0.0
        %723 = vmatpush1.msra.mxu0 %v438
        %724 = vmatprep.subr.mxu0 0.0
        %725 = vmatpush1.msra.mxu0 %v439
        %726 = vmatprep.subr.mxu0 0.0
        %727 = vmatpush1.msra.mxu0 %v440
        %728 = vmatprep.subr.mxu0 0.0
        %729 = vmatpush1.msra.mxu0 0.0
        %730 = vmatprep.subr.mxu0 0.0
        %731 = vmatpush1.msra.mxu0 0.0
        %732 = vmatprep.subr.mxu0 0.0
        %733 = vmatpush1.msra.mxu0 0.0
        %734 = vmatprep.subr.mxu0 0.0
        %735 = vmatpush1.msra.mxu0 0.0
        %736 = vmatprep.subr.mxu0 0.0
        %737 = vmatpush1.msra.mxu0 0.0
        %738 = vmatprep.subr.mxu0 0.0
        %739 = vmatpush1.msra.mxu0 0.0
        %740 = vmatprep.subr.mxu0 0.0
        %741 = vmatpush1.msra.mxu0 0.0
        %742 = vmatprep.subr.mxu0 0.0
        %743 = vmatpush1.msra.mxu0 0.0
        %744 = vmatprep.subr.mxu0 0.0
        %745 = vmatpush1.msra.mxu0 0.0
        %746 = vmatprep.subr.mxu0 0.0
        %747 = vmatpush1.msra.mxu0 0.0
        %748 = vmatprep.subr.mxu0 0.0
        %749 = vmatpush1.msra.mxu0 0.0
        %750 = vmatprep.subr.mxu0 0.0
        %751 = vmatpush1.msra.mxu0 0.0
        %752 = vmatprep.subr.mxu0 0.0
        %753 = vmatpush1.msra.mxu0 0.0
        %754 = vmatprep.subr.mxu0 0.0
        %755 = vmatpush1.msra.mxu0 0.0
        %756 = vmatprep.subr.mxu0 0.0
        %757 = vmatpush1.msra.mxu0 0.0
        %758 = vmatprep.subr.mxu0 0.0
        %759 = vmatpush1.msra.mxu0 0.0
        %760 = vmatprep.mubr.f32.mxu0 0.0
        %761 = vmatmul.mubr.f32.gmra.mrb[0].mxu0 %v695
        %v762 = vpop.f32.mrb[0].mxu0
        %v763 = vadd.f32 0.0, %v762
        %v764 = vpop.f32.mrb[0].mxu0
        %765 = vdwg.mxu0
        %v766 = vadd.f32 %v694, %v763
        %v767 = vsub.f32 1.0, %v681
        %v768 = vmul.f32 %v767, %v443
        %v769 = vtanh.pop %v766
        %v770 = vmul.f32 %v681, %v769
        %v771 = vadd.f32 %v768, %v770
        %772 = vst [vmem:[%s376] sm:$0xff] %v771
        %s773 = scalar_lea.vmem %s330, 8 [#allocation2]
        %v774 = vld [vmem:[%s773] sm:$0xff]
        %v776 = vsel %vm445, %v774, 0
        %778 = vmatprep.subr.mxu0 %v388
        %779 = vmatpush1.msra.mxu0 %v387
        %780 = vmatprep.subr.mxu0 %v391
        %781 = vmatpush1.msra.mxu0 %v390
        %782 = vmatprep.subr.mxu0 0.0
        %783 = vmatpush1.msra.mxu0 0.0
        %784 = vmatprep.subr.mxu0 0.0
        %785 = vmatpush1.msra.mxu0 0.0
        %786 = vmatprep.subr.mxu0 0.0
        %787 = vmatpush1.msra.mxu0 0.0
        %788 = vmatprep.subr.mxu0 0.0
        %789 = vmatpush1.msra.mxu0 0.0
        %790 = vmatprep.subr.mxu0 0.0
        %791 = vmatpush1.msra.mxu0 0.0
        %792 = vmatprep.subr.mxu0 0.0
        %793 = vmatpush1.msra.mxu0 0.0
        %794 = vmatprep.subr.mxu0 0.0
        %795 = vmatpush1.msra.mxu0 0.0
        %796 = vmatprep.subr.mxu0 0.0
        %797 = vmatpush1.msra.mxu0 0.0
        %798 = vmatprep.subr.mxu0 0.0
        %799 = vmatpush1.msra.mxu0 0.0
        %800 = vmatprep.subr.mxu0 0.0
        %801 = vmatpush1.msra.mxu0 0.0
        %802 = vmatprep.subr.mxu0 0.0
        %803 = vmatpush1.msra.mxu0 0.0
        %804 = vmatprep.subr.mxu0 0.0
        %805 = vmatpush1.msra.mxu0 0.0
        %806 = vmatprep.subr.mxu0 0.0
        %807 = vmatpush1.msra.mxu0 0.0
        %808 = vmatprep.subr.mxu0 0.0
        %809 = vmatpush1.msra.mxu0 0.0
        %810 = vmatprep.subr.mxu0 0.0
        %811 = vmatpush1.msra.mxu0 0.0
        %812 = vmatprep.subr.mxu0 0.0
        %813 = vmatpush1.msra.mxu0 0.0
        %814 = vmatprep.subr.mxu0 0.0
        %815 = vmatpush1.msra.mxu0 0.0
        %816 = vmatprep.subr.mxu0 0.0
        %817 = vmatpush1.msra.mxu0 0.0
        %818 = vmatprep.subr.mxu0 0.0
        %819 = vmatpush1.msra.mxu0 0.0
        %820 = vmatprep.subr.mxu0 0.0
        %821 = vmatpush1.msra.mxu0 0.0
        %822 = vmatprep.subr.mxu0 0.0
        %823 = vmatpush1.msra.mxu0 0.0
        %824 = vmatprep.subr.mxu0 0.0
        %825 = vmatpush1.msra.mxu0 0.0
        %826 = vmatprep.subr.mxu0 0.0
        %827 = vmatpush1.msra.mxu0 0.0
        %828 = vmatprep.subr.mxu0 0.0
        %829 = vmatpush1.msra.mxu0 0.0
        %830 = vmatprep.subr.mxu0 0.0
        %831 = vmatpush1.msra.mxu0 0.0
        %832 = vmatprep.subr.mxu0 0.0
        %833 = vmatpush1.msra.mxu0 0.0
        %834 = vmatprep.subr.mxu0 0.0
        %835 = vmatpush1.msra.mxu0 0.0
        %836 = vmatprep.subr.mxu0 0.0
        %837 = vmatpush1.msra.mxu0 0.0
        %838 = vmatprep.subr.mxu0 0.0
        %839 = vmatpush1.msra.mxu0 0.0
        %840 = vmatprep.subr.mxu0 0.0
        %841 = vmatpush1.msra.mxu0 0.0
        %842 = vmatprep.mubr.f32.mxu0 0.0
        %843 = vmatmul.mubr.f32.gmra.mrb[0].mxu0 %v776
        %v844 = vpop.f32.mrb[0].mxu0
        %v845 = vadd.f32 0.0, %v844
        %v846 = vpop.f32.mrb[0].mxu0
        %v847 = vadd.f32 0.0, %v846
        %848 = vdwg.mxu0
        %849 = vmatprep.subr.mxu0 0.0
        %850 = vmatpush1.msra.mxu0 %v389
        %851 = vmatprep.subr.mxu0 0.0
        %852 = vmatpush1.msra.mxu0 %v392
        %853 = vmatprep.subr.mxu0 0.0
        %854 = vmatpush1.msra.mxu0 0.0
        %855 = vmatprep.subr.mxu0 0.0
        %856 = vmatpush1.msra.mxu0 0.0
        %857 = vmatprep.subr.mxu0 0.0
        %858 = vmatpush1.msra.mxu0 0.0
        %859 = vmatprep.subr.mxu0 0.0
        %860 = vmatpush1.msra.mxu0 0.0
        %861 = vmatprep.subr.mxu0 0.0
        %862 = vmatpush1.msra.mxu0 0.0
        %863 = vmatprep.subr.mxu0 0.0
        %864 = vmatpush1.msra.mxu0 0.0
        %865 = vmatprep.subr.mxu0 0.0
        %866 = vmatpush1.msra.mxu0 0.0
        %867 = vmatprep.subr.mxu0 0.0
        %868 = vmatpush1.msra.mxu0 0.0
        %869 = vmatprep.subr.mxu0 0.0
        %870 = vmatpush1.msra.mxu0 0.0
        %871 = vmatprep.subr.mxu0 0.0
        %872 = vmatpush1.msra.mxu0 0.0
        %873 = vmatprep.subr.mxu0 0.0
        %874 = vmatpush1.msra.mxu0 0.0
        %875 = vmatprep.subr.mxu0 0.0
        %876 = vmatpush1.msra.mxu0 0.0
        %877 = vmatprep.subr.mxu0 0.0
        %878 = vmatpush1.msra.mxu0 0.0
        %879 = vmatprep.subr.mxu0 0.0
        %880 = vmatpush1.msra.mxu0 0.0
        %881 = vmatprep.subr.mxu0 0.0
        %882 = vmatpush1.msra.mxu0 0.0
        %883 = vmatprep.subr.mxu0 0.0
        %884 = vmatpush1.msra.mxu0 0.0
        %885 = vmatprep.subr.mxu0 0.0
        %886 = vmatpush1.msra.mxu0 0.0
        %887 = vmatprep.subr.mxu0 0.0
        %888 = vmatpush1.msra.mxu0 0.0
        %889 = vmatprep.subr.mxu0 0.0
        %890 = vmatpush1.msra.mxu0 0.0
        %891 = vmatprep.subr.mxu0 0.0
        %892 = vmatpush1.msra.mxu0 0.0
        %893 = vmatprep.subr.mxu0 0.0
        %894 = vmatpush1.msra.mxu0 0.0
        %895 = vmatprep.subr.mxu0 0.0
        %896 = vmatpush1.msra.mxu0 0.0
        %897 = vmatprep.subr.mxu0 0.0
        %898 = vmatpush1.msra.mxu0 0.0
        %899 = vmatprep.subr.mxu0 0.0
        %900 = vmatpush1.msra.mxu0 0.0
        %901 = vmatprep.subr.mxu0 0.0
        %902 = vmatpush1.msra.mxu0 0.0
        %903 = vmatprep.subr.mxu0 0.0
        %904 = vmatpush1.msra.mxu0 0.0
        %905 = vmatprep.subr.mxu0 0.0
        %906 = vmatpush1.msra.mxu0 0.0
        %907 = vmatprep.subr.mxu0 0.0
        %908 = vmatpush1.msra.mxu0 0.0
        %909 = vmatprep.subr.mxu0 0.0
        %910 = vmatpush1.msra.mxu0 0.0
        %911 = vmatprep.subr.mxu0 0.0
        %912 = vmatpush1.msra.mxu0 0.0
        %913 = vmatprep.mubr.f32.mxu0 0.0
        %914 = vmatmul.mubr.f32.gmra.mrb[0].mxu0 %v776
        %v915 = vpop.f32.mrb[0].mxu0
        %v916 = vadd.f32 0.0, %v915
        %v917 = vpop.f32.mrb[0].mxu0
        %918 = vdwg.mxu0
        %919 = vmatprep.subr.mxu0 %v394
        %920 = vmatpush1.msra.mxu0 %v393
        %921 = vmatprep.subr.mxu0 %v396
        %922 = vmatpush1.msra.mxu0 %v395
        %923 = vmatprep.subr.mxu0 %v398
        %924 = vmatpush1.msra.mxu0 %v397
        %925 = vmatprep.subr.mxu0 %v400
        %926 = vmatpush1.msra.mxu0 %v399
        %927 = vmatprep.subr.mxu0 %v402
        %928 = vmatpush1.msra.mxu0 %v401
        %929 = vmatprep.subr.mxu0 %v404
        %930 = vmatpush1.msra.mxu0 %v403
        %931 = vmatprep.subr.mxu0 %v406
        %932 = vmatpush1.msra.mxu0 %v405
        %933 = vmatprep.subr.mxu0 %v408
        %934 = vmatpush1.msra.mxu0 %v407
        %935 = vmatprep.subr.mxu0 %v410
        %936 = vmatpush1.msra.mxu0 %v409
        %937 = vmatprep.subr.mxu0 %v412
        %938 = vmatpush1.msra.mxu0 %v411
        %939 = vmatprep.subr.mxu0 %v414
        %940 = vmatpush1.msra.mxu0 %v413
        %941 = vmatprep.subr.mxu0 %v416
        %942 = vmatpush1.msra.mxu0 %v415
        %943 = vmatprep.subr.mxu0 %v418
        %944 = vmatpush1.msra.mxu0 %v417
        %945 = vmatprep.subr.mxu0 %v420
        %946 = vmatpush1.msra.mxu0 %v419
        %947 = vmatprep.subr.mxu0 %v422
        %948 = vmatpush1.msra.mxu0 %v421
        %949 = vmatprep.subr.mxu0 %v424
        %950 = vmatpush1.msra.mxu0 %v423
        %951 = vmatprep.subr.mxu0 0.0
        %952 = vmatpush1.msra.mxu0 0.0
        %953 = vmatprep.subr.mxu0 0.0
        %954 = vmatpush1.msra.mxu0 0.0
        %955 = vmatprep.subr.mxu0 0.0
        %956 = vmatpush1.msra.mxu0 0.0
        %957 = vmatprep.subr.mxu0 0.0
        %958 = vmatpush1.msra.mxu0 0.0
        %959 = vmatprep.subr.mxu0 0.0
        %960 = vmatpush1.msra.mxu0 0.0
        %961 = vmatprep.subr.mxu0 0.0
        %962 = vmatpush1.msra.mxu0 0.0
        %963 = vmatprep.subr.mxu0 0.0
        %964 = vmatpush1.msra.mxu0 0.0
        %965 = vmatprep.subr.mxu0 0.0
        %966 = vmatpush1.msra.mxu0 0.0
        %967 = vmatprep.subr.mxu0 0.0
        %968 = vmatpush1.msra.mxu0 0.0
        %969 = vmatprep.subr.mxu0 0.0
        %970 = vmatpush1.msra.mxu0 0.0
        %971 = vmatprep.subr.mxu0 0.0
        %972 = vmatpush1.msra.mxu0 0.0
        %973 = vmatprep.subr.mxu0 0.0
        %974 = vmatpush1.msra.mxu0 0.0
        %975 = vmatprep.subr.mxu0 0.0
        %976 = vmatpush1.msra.mxu0 0.0
        %977 = vmatprep.subr.mxu0 0.0
        %978 = vmatpush1.msra.mxu0 0.0
        %979 = vmatprep.subr.mxu0 0.0
        %980 = vmatpush1.msra.mxu0 0.0
        %981 = vmatprep.subr.mxu0 0.0
        %982 = vmatpush1.msra.mxu0 0.0
        %983 = vmatprep.mubr.f32.mxu0 0.0
        %984 = vmatmul.mubr.f32.gmra.mrb[0].mxu0 %v771
        %v985 = vpop.f32.mrb[0].mxu0
        %v986 = vadd.f32 0.0, %v985
        %v987 = vpop.f32.mrb[0].mxu0
        %v988 = vadd.f32 0.0, %v987
        %989 = vdwg.mxu0
        %v990 = vadd.f32 %v845, %v986
        %v991 = vadd.f32 %v847, %v988
        %v992 = vadd.f32 %v990, %v667
        %v993 = vadd.f32 %v991, %v671
        %v994 = vxor.u32 %v992, 2147483648
        %v995 = vmul.f32 %v994, 1.442695
        %v996 = vpow.pop %v995
        %v997 = vadd.f32 %v996, 1.0
        %v998 = vrcp.pop %v997
        %v999 = vmul.f32 1.0, %v998
        %v1000 = vxor.u32 %v993, 2147483648
        %v1001 = vmul.f32 %v1000, 1.442695
        %v1002 = vpow.pop %v1001
        %v1003 = vadd.f32 %v1002, 1.0
        %v1004 = vrcp.pop %v1003
        %v1005 = vmul.f32 1.0, %v1004
        %v1006 = vadd.f32 %v916, %v692
        %v1007 = vmul.f32 %v1005, %v771
        %1008 = vmatprep.subr.mxu0 0.0
        %1009 = vmatpush1.msra.mxu0 %v425
        %1010 = vmatprep.subr.mxu0 0.0
        %1011 = vmatpush1.msra.mxu0 %v426
        %1012 = vmatprep.subr.mxu0 0.0
        %1013 = vmatpush1.msra.mxu0 %v427
        %1014 = vmatprep.subr.mxu0 0.0
        %1015 = vmatpush1.msra.mxu0 %v428
        %1016 = vmatprep.subr.mxu0 0.0
        %1017 = vmatpush1.msra.mxu0 %v429
        %1018 = vmatprep.subr.mxu0 0.0
        %1019 = vmatpush1.msra.mxu0 %v430
        %1020 = vmatprep.subr.mxu0 0.0
        %1021 = vmatpush1.msra.mxu0 %v431
        %1022 = vmatprep.subr.mxu0 0.0
        %1023 = vmatpush1.msra.mxu0 %v432
        %1024 = vmatprep.subr.mxu0 0.0
        %1025 = vmatpush1.msra.mxu0 %v433
        %1026 = vmatprep.subr.mxu0 0.0
        %1027 = vmatpush1.msra.mxu0 %v434
        %1028 = vmatprep.subr.mxu0 0.0
        %1029 = vmatpush1.msra.mxu0 %v435
        %1030 = vmatprep.subr.mxu0 0.0
        %1031 = vmatpush1.msra.mxu0 %v436
        %1032 = vmatprep.subr.mxu0 0.0
        %1033 = vmatpush1.msra.mxu0 %v437
        %1034 = vmatprep.subr.mxu0 0.0
        %1035 = vmatpush1.msra.mxu0 %v438
        %1036 = vmatprep.subr.mxu0 0.0
        %1037 = vmatpush1.msra.mxu0 %v439
        %1038 = vmatprep.subr.mxu0 0.0
        %1039 = vmatpush1.msra.mxu0 %v440
        %1040 = vmatprep.subr.mxu0 0.0
        %1041 = vmatpush1.msra.mxu0 0.0
        %1042 = vmatprep.subr.mxu0 0.0
        %1043 = vmatpush1.msra.mxu0 0.0
        %1044 = vmatprep.subr.mxu0 0.0
        %1045 = vmatpush1.msra.mxu0 0.0
        %1046 = vmatprep.subr.mxu0 0.0
        %1047 = vmatpush1.msra.mxu0 0.0
        %1048 = vmatprep.subr.mxu0 0.0
        %1049 = vmatpush1.msra.mxu0 0.0
        %1050 = vmatprep.subr.mxu0 0.0
        %1051 = vmatpush1.msra.mxu0 0.0
        %1052 = vmatprep.subr.mxu0 0.0
        %1053 = vmatpush1.msra.mxu0 0.0
        %1054 = vmatprep.subr.mxu0 0.0
        %1055 = vmatpush1.msra.mxu0 0.0
        %1056 = vmatprep.subr.mxu0 0.0
        %1057 = vmatpush1.msra.mxu0 0.0
        %1058 = vmatprep.subr.mxu0 0.0
        %1059 = vmatpush1.msra.mxu0 0.0
        %1060 = vmatprep.subr.mxu0 0.0
        %1061 = vmatpush1.msra.mxu0 0.0
        %1062 = vmatprep.subr.mxu0 0.0
        %1063 = vmatpush1.msra.mxu0 0.0
        %1064 = vmatprep.subr.mxu0 0.0
        %1065 = vmatpush1.msra.mxu0 0.0
        %1066 = vmatprep.subr.mxu0 0.0
        %1067 = vmatpush1.msra.mxu0 0.0
        %1068 = vmatprep.subr.mxu0 0.0
        %1069 = vmatpush1.msra.mxu0 0.0
        %1070 = vmatprep.subr.mxu0 0.0
        %1071 = vmatpush1.msra.mxu0 0.0
        %1072 = vmatprep.mubr.f32.mxu0 0.0
        %1073 = vmatmul.mubr.f32.gmra.mrb[0].mxu0 %v1007
        %v1074 = vpop.f32.mrb[0].mxu0
        %v1075 = vadd.f32 0.0, %v1074
        %v1076 = vpop.f32.mrb[0].mxu0
        %1077 = vdwg.mxu0
        %v1078 = vadd.f32 %v1006, %v1075
        %v1079 = vsub.f32 1.0, %v999
        %v1080 = vmul.f32 %v1079, %v771
        %v1081 = vtanh.pop %v1078
        %v1082 = vmul.f32 %v999, %v1081
        %v1083 = vadd.f32 %v1080, %v1082
        %s1084 = scalar_lea.vmem %s376, 8 [#allocation11]
        %1085 = vst [vmem:[%s1084] sm:$0xff] %v1083
        %s1086 = scalar_lea.vmem %s330, 16 [#allocation2]
        %v1087 = vld [vmem:[%s1086] sm:$0xff]
        %v1089 = vsel %vm445, %v1087, 0
        %1091 = vmatprep.subr.mxu0 %v388
        %1092 = vmatpush1.msra.mxu0 %v387
        %1093 = vmatprep.subr.mxu0 %v391
        %1094 = vmatpush1.msra.mxu0 %v390
        %1095 = vmatprep.subr.mxu0 0.0
        %1096 = vmatpush1.msra.mxu0 0.0
        %1097 = vmatprep.subr.mxu0 0.0
        %1098 = vmatpush1.msra.mxu0 0.0
        %1099 = vmatprep.subr.mxu0 0.0
        %1100 = vmatpush1.msra.mxu0 0.0
        %1101 = vmatprep.subr.mxu0 0.0
        %1102 = vmatpush1.msra.mxu0 0.0
        %1103 = vmatprep.subr.mxu0 0.0
        %1104 = vmatpush1.msra.mxu0 0.0
        %1105 = vmatprep.subr.mxu0 0.0
        %1106 = vmatpush1.msra.mxu0 0.0
        %1107 = vmatprep.subr.mxu0 0.0
        %1108 = vmatpush1.msra.mxu0 0.0
        %1109 = vmatprep.subr.mxu0 0.0
        %1110 = vmatpush1.msra.mxu0 0.0
        %1111 = vmatprep.subr.mxu0 0.0
        %1112 = vmatpush1.msra.mxu0 0.0
        %1113 = vmatprep.subr.mxu0 0.0
        %1114 = vmatpush1.msra.mxu0 0.0
        %1115 = vmatprep.subr.mxu0 0.0
        %1116 = vmatpush1.msra.mxu0 0.0
        %1117 = vmatprep.subr.mxu0 0.0
        %1118 = vmatpush1.msra.mxu0 0.0
        %1119 = vmatprep.subr.mxu0 0.0
        %1120 = vmatpush1.msra.mxu0 0.0
        %1121 = vmatprep.subr.mxu0 0.0
        %1122 = vmatpush1.msra.mxu0 0.0
        %1123 = vmatprep.subr.mxu0 0.0
        %1124 = vmatpush1.msra.mxu0 0.0
        %1125 = vmatprep.subr.mxu0 0.0
        %1126 = vmatpush1.msra.mxu0 0.0
        %1127 = vmatprep.subr.mxu0 0.0
        %1128 = vmatpush1.msra.mxu0 0.0
        %1129 = vmatprep.subr.mxu0 0.0
        %1130 = vmatpush1.msra.mxu0 0.0
        %1131 = vmatprep.subr.mxu0 0.0
        %1132 = vmatpush1.msra.mxu0 0.0
        %1133 = vmatprep.subr.mxu0 0.0
        %1134 = vmatpush1.msra.mxu0 0.0
        %1135 = vmatprep.subr.mxu0 0.0
        %1136 = vmatpush1.msra.mxu0 0.0
        %1137 = vmatprep.subr.mxu0 0.0
        %1138 = vmatpush1.msra.mxu0 0.0
        %1139 = vmatprep.subr.mxu0 0.0
        %1140 = vmatpush1.msra.mxu0 0.0
        %1141 = vmatprep.subr.mxu0 0.0
        %1142 = vmatpush1.msra.mxu0 0.0
        %1143 = vmatprep.subr.mxu0 0.0
        %1144 = vmatpush1.msra.mxu0 0.0
        %1145 = vmatprep.subr.mxu0 0.0
        %1146 = vmatpush1.msra.mxu0 0.0
        %1147 = vmatprep.subr.mxu0 0.0
        %1148 = vmatpush1.msra.mxu0 0.0
        %1149 = vmatprep.subr.mxu0 0.0
        %1150 = vmatpush1.msra.mxu0 0.0
        %1151 = vmatprep.subr.mxu0 0.0
        %1152 = vmatpush1.msra.mxu0 0.0
        %1153 = vmatprep.subr.mxu0 0.0
        %1154 = vmatpush1.msra.mxu0 0.0
        %1155 = vmatprep.mubr.f32.mxu0 0.0
        %1156 = vmatmul.mubr.f32.gmra.mrb[0].mxu0 %v1089
        %v1157 = vpop.f32.mrb[0].mxu0
        %v1158 = vadd.f32 0.0, %v1157
        %v1159 = vpop.f32.mrb[0].mxu0
        %v1160 = vadd.f32 0.0, %v1159
        %1161 = vdwg.mxu0
        %1162 = vmatprep.subr.mxu0 0.0
        %1163 = vmatpush1.msra.mxu0 %v389
        %1164 = vmatprep.subr.mxu0 0.0
        %1165 = vmatpush1.msra.mxu0 %v392
        %1166 = vmatprep.subr.mxu0 0.0
        %1167 = vmatpush1.msra.mxu0 0.0
        %1168 = vmatprep.subr.mxu0 0.0
        %1169 = vmatpush1.msra.mxu0 0.0
        %1170 = vmatprep.subr.mxu0 0.0
        %1171 = vmatpush1.msra.mxu0 0.0
        %1172 = vmatprep.subr.mxu0 0.0
        %1173 = vmatpush1.msra.mxu0 0.0
        %1174 = vmatprep.subr.mxu0 0.0
        %1175 = vmatpush1.msra.mxu0 0.0
        %1176 = vmatprep.subr.mxu0 0.0
        %1177 = vmatpush1.msra.mxu0 0.0
        %1178 = vmatprep.subr.mxu0 0.0
        %1179 = vmatpush1.msra.mxu0 0.0
        %1180 = vmatprep.subr.mxu0 0.0
        %1181 = vmatpush1.msra.mxu0 0.0
        %1182 = vmatprep.subr.mxu0 0.0
        %1183 = vmatpush1.msra.mxu0 0.0
        %1184 = vmatprep.subr.mxu0 0.0
        %1185 = vmatpush1.msra.mxu0 0.0
        %1186 = vmatprep.subr.mxu0 0.0
        %1187 = vmatpush1.msra.mxu0 0.0
        %1188 = vmatprep.subr.mxu0 0.0
        %1189 = vmatpush1.msra.mxu0 0.0
        %1190 = vmatprep.subr.mxu0 0.0
        %1191 = vmatpush1.msra.mxu0 0.0
        %1192 = vmatprep.subr.mxu0 0.0
        %1193 = vmatpush1.msra.mxu0 0.0
        %1194 = vmatprep.subr.mxu0 0.0
        %1195 = vmatpush1.msra.mxu0 0.0
        %1196 = vmatprep.subr.mxu0 0.0
        %1197 = vmatpush1.msra.mxu0 0.0
        %1198 = vmatprep.subr.mxu0 0.0
        %1199 = vmatpush1.msra.mxu0 0.0
        %1200 = vmatprep.subr.mxu0 0.0
        %1201 = vmatpush1.msra.mxu0 0.0
        %1202 = vmatprep.subr.mxu0 0.0
        %1203 = vmatpush1.msra.mxu0 0.0
        %1204 = vmatprep.subr.mxu0 0.0
        %1205 = vmatpush1.msra.mxu0 0.0
        %1206 = vmatprep.subr.mxu0 0.0
        %1207 = vmatpush1.msra.mxu0 0.0
        %1208 = vmatprep.subr.mxu0 0.0
        %1209 = vmatpush1.msra.mxu0 0.0
        %1210 = vmatprep.subr.mxu0 0.0
        %1211 = vmatpush1.msra.mxu0 0.0
        %1212 = vmatprep.subr.mxu0 0.0
        %1213 = vmatpush1.msra.mxu0 0.0
        %1214 = vmatprep.subr.mxu0 0.0
        %1215 = vmatpush1.msra.mxu0 0.0
        %1216 = vmatprep.subr.mxu0 0.0
        %1217 = vmatpush1.msra.mxu0 0.0
        %1218 = vmatprep.subr.mxu0 0.0
        %1219 = vmatpush1.msra.mxu0 0.0
        %1220 = vmatprep.subr.mxu0 0.0
        %1221 = vmatpush1.msra.mxu0 0.0
        %1222 = vmatprep.subr.mxu0 0.0
        %1223 = vmatpush1.msra.mxu0 0.0
        %1224 = vmatprep.subr.mxu0 0.0
        %1225 = vmatpush1.msra.mxu0 0.0
        %1226 = vmatprep.mubr.f32.mxu0 0.0
        %1227 = vmatmul.mubr.f32.gmra.mrb[0].mxu0 %v1089
        %v1228 = vpop.f32.mrb[0].mxu0
        %v1229 = vadd.f32 0.0, %v1228
        %v1230 = vpop.f32.mrb[0].mxu0
        %1231 = vdwg.mxu0
        %1232 = vmatprep.subr.mxu0 %v394
        %1233 = vmatpush1.msra.mxu0 %v393
        %1234 = vmatprep.subr.mxu0 %v396
        %1235 = vmatpush1.msra.mxu0 %v395
        %1236 = vmatprep.subr.mxu0 %v398
        %1237 = vmatpush1.msra.mxu0 %v397
        %1238 = vmatprep.subr.mxu0 %v400
        %1239 = vmatpush1.msra.mxu0 %v399
        %1240 = vmatprep.subr.mxu0 %v402
        %1241 = vmatpush1.msra.mxu0 %v401
        %1242 = vmatprep.subr.mxu0 %v404
        %1243 = vmatpush1.msra.mxu0 %v403
        %1244 = vmatprep.subr.mxu0 %v406
        %1245 = vmatpush1.msra.mxu0 %v405
        %1246 = vmatprep.subr.mxu0 %v408
        %1247 = vmatpush1.msra.mxu0 %v407
        %1248 = vmatprep.subr.mxu0 %v410
        %1249 = vmatpush1.msra.mxu0 %v409
        %1250 = vmatprep.subr.mxu0 %v412
        %1251 = vmatpush1.msra.mxu0 %v411
        %1252 = vmatprep.subr.mxu0 %v414
        %1253 = vmatpush1.msra.mxu0 %v413
        %1254 = vmatprep.subr.mxu0 %v416
        %1255 = vmatpush1.msra.mxu0 %v415
        %1256 = vmatprep.subr.mxu0 %v418
        %1257 = vmatpush1.msra.mxu0 %v417
        %1258 = vmatprep.subr.mxu0 %v420
        %1259 = vmatpush1.msra.mxu0 %v419
        %1260 = vmatprep.subr.mxu0 %v422
        %1261 = vmatpush1.msra.mxu0 %v421
        %1262 = vmatprep.subr.mxu0 %v424
        %1263 = vmatpush1.msra.mxu0 %v423
        %1264 = vmatprep.subr.mxu0 0.0
        %1265 = vmatpush1.msra.mxu0 0.0
        %1266 = vmatprep.subr.mxu0 0.0
        %1267 = vmatpush1.msra.mxu0 0.0
        %1268 = vmatprep.subr.mxu0 0.0
        %1269 = vmatpush1.msra.mxu0 0.0
        %1270 = vmatprep.subr.mxu0 0.0
        %1271 = vmatpush1.msra.mxu0 0.0
        %1272 = vmatprep.subr.mxu0 0.0
        %1273 = vmatpush1.msra.mxu0 0.0
        %1274 = vmatprep.subr.mxu0 0.0
        %1275 = vmatpush1.msra.mxu0 0.0
        %1276 = vmatprep.subr.mxu0 0.0
        %1277 = vmatpush1.msra.mxu0 0.0
        %1278 = vmatprep.subr.mxu0 0.0
        %1279 = vmatpush1.msra.mxu0 0.0
        %1280 = vmatprep.subr.mxu0 0.0
        %1281 = vmatpush1.msra.mxu0 0.0
        %1282 = vmatprep.subr.mxu0 0.0
        %1283 = vmatpush1.msra.mxu0 0.0
        %1284 = vmatprep.subr.mxu0 0.0
        %1285 = vmatpush1.msra.mxu0 0.0
        %1286 = vmatprep.subr.mxu0 0.0
        %1287 = vmatpush1.msra.mxu0 0.0
        %1288 = vmatprep.subr.mxu0 0.0
        %1289 = vmatpush1.msra.mxu0 0.0
        %1290 = vmatprep.subr.mxu0 0.0
        %1291 = vmatpush1.msra.mxu0 0.0
        %1292 = vmatprep.subr.mxu0 0.0
        %1293 = vmatpush1.msra.mxu0 0.0
        %1294 = vmatprep.subr.mxu0 0.0
        %1295 = vmatpush1.msra.mxu0 0.0
        %1296 = vmatprep.mubr.f32.mxu0 0.0
        %1297 = vmatmul.mubr.f32.gmra.mrb[0].mxu0 %v1083
        %v1298 = vpop.f32.mrb[0].mxu0
        %v1299 = vadd.f32 0.0, %v1298
        %v1300 = vpop.f32.mrb[0].mxu0
        %v1301 = vadd.f32 0.0, %v1300
        %1302 = vdwg.mxu0
        %v1303 = vadd.f32 %v1158, %v1299
        %v1304 = vadd.f32 %v1160, %v1301
        %v1305 = vadd.f32 %v1303, %v667
        %v1306 = vadd.f32 %v1304, %v671
        %v1307 = vxor.u32 %v1305, 2147483648
        %v1308 = vmul.f32 %v1307, 1.442695
        %v1309 = vpow.pop %v1308
        %v1310 = vadd.f32 %v1309, 1.0
        %v1311 = vrcp.pop %v1310
        %v1312 = vmul.f32 1.0, %v1311
        %v1313 = vxor.u32 %v1306, 2147483648
        %v1314 = vmul.f32 %v1313, 1.442695
        %v1315 = vpow.pop %v1314
        %v1316 = vadd.f32 %v1315, 1.0
        %v1317 = vrcp.pop %v1316
        %v1318 = vmul.f32 1.0, %v1317
        %v1319 = vadd.f32 %v1229, %v692
        %v1320 = vmul.f32 %v1318, %v1083
        %1321 = vmatprep.subr.mxu0 0.0
        %1322 = vmatpush1.msra.mxu0 %v425
        %1323 = vmatprep.subr.mxu0 0.0
        %1324 = vmatpush1.msra.mxu0 %v426
        %1325 = vmatprep.subr.mxu0 0.0
        %1326 = vmatpush1.msra.mxu0 %v427
        %1327 = vmatprep.subr.mxu0 0.0
        %1328 = vmatpush1.msra.mxu0 %v428
        %1329 = vmatprep.subr.mxu0 0.0
        %1330 = vmatpush1.msra.mxu0 %v429
        %1331 = vmatprep.subr.mxu0 0.0
        %1332 = vmatpush1.msra.mxu0 %v430
        %1333 = vmatprep.subr.mxu0 0.0
        %1334 = vmatpush1.msra.mxu0 %v431
        %1335 = vmatprep.subr.mxu0 0.0
        %1336 = vmatpush1.msra.mxu0 %v432
        %1337 = vmatprep.subr.mxu0 0.0
        %1338 = vmatpush1.msra.mxu0 %v433
        %1339 = vmatprep.subr.mxu0 0.0
        %1340 = vmatpush1.msra.mxu0 %v434
        %1341 = vmatprep.subr.mxu0 0.0
        %1342 = vmatpush1.msra.mxu0 %v435
        %1343 = vmatprep.subr.mxu0 0.0
        %1344 = vmatpush1.msra.mxu0 %v436
        %1345 = vmatprep.subr.mxu0 0.0
        %1346 = vmatpush1.msra.mxu0 %v437
        %1347 = vmatprep.subr.mxu0 0.0
        %1348 = vmatpush1.msra.mxu0 %v438
        %1349 = vmatprep.subr.mxu0 0.0
        %1350 = vmatpush1.msra.mxu0 %v439
        %1351 = vmatprep.subr.mxu0 0.0
        %1352 = vmatpush1.msra.mxu0 %v440
        %1353 = vmatprep.subr.mxu0 0.0
        %1354 = vmatpush1.msra.mxu0 0.0
        %1355 = vmatprep.subr.mxu0 0.0
        %1356 = vmatpush1.msra.mxu0 0.0
        %1357 = vmatprep.subr.mxu0 0.0
        %1358 = vmatpush1.msra.mxu0 0.0
        %1359 = vmatprep.subr.mxu0 0.0
        %1360 = vmatpush1.msra.mxu0 0.0
        %1361 = vmatprep.subr.mxu0 0.0
        %1362 = vmatpush1.msra.mxu0 0.0
        %1363 = vmatprep.subr.mxu0 0.0
        %1364 = vmatpush1.msra.mxu0 0.0
        %1365 = vmatprep.subr.mxu0 0.0
        %1366 = vmatpush1.msra.mxu0 0.0
        %1367 = vmatprep.subr.mxu0 0.0
        %1368 = vmatpush1.msra.mxu0 0.0
        %1369 = vmatprep.subr.mxu0 0.0
        %1370 = vmatpush1.msra.mxu0 0.0
        %1371 = vmatprep.subr.mxu0 0.0
        %1372 = vmatpush1.msra.mxu0 0.0
        %1373 = vmatprep.subr.mxu0 0.0
        %1374 = vmatpush1.msra.mxu0 0.0
        %1375 = vmatprep.subr.mxu0 0.0
        %1376 = vmatpush1.msra.mxu0 0.0
        %1377 = vmatprep.subr.mxu0 0.0
        %1378 = vmatpush1.msra.mxu0 0.0
        %1379 = vmatprep.subr.mxu0 0.0
        %1380 = vmatpush1.msra.mxu0 0.0
        %1381 = vmatprep.subr.mxu0 0.0
        %1382 = vmatpush1.msra.mxu0 0.0
        %1383 = vmatprep.subr.mxu0 0.0
        %1384 = vmatpush1.msra.mxu0 0.0
        %1385 = vmatprep.mubr.f32.mxu0 0.0
        %1386 = vmatmul.mubr.f32.gmra.mrb[0].mxu0 %v1320
        %v1387 = vpop.f32.mrb[0].mxu0
        %v1388 = vadd.f32 0.0, %v1387
        %v1389 = vpop.f32.mrb[0].mxu0
        %1390 = vdwg.mxu0
        %v1391 = vadd.f32 %v1319, %v1388
        %v1392 = vsub.f32 1.0, %v1312
        %v1393 = vmul.f32 %v1392, %v1083
        %v1394 = vtanh.pop %v1391
        %v1395 = vmul.f32 %v1312, %v1394
        %v1396 = vadd.f32 %v1393, %v1395
        %s1397 = scalar_lea.vmem %s376, 16 [#allocation11]
        %1398 = vst [vmem:[%s1397] sm:$0xff] %v1396
        %s1399 = scalar_lea.vmem %s330, 24 [#allocation2]
        %v1400 = vld [vmem:[%s1399] sm:$0xff]
        %v1402 = vsel %vm445, %v1400, 0
        %1404 = vmatprep.subr.mxu0 %v388
        %1405 = vmatpush1.msra.mxu0 %v387
        %1406 = vmatprep.subr.mxu0 %v391
        %1407 = vmatpush1.msra.mxu0 %v390
        %1408 = vmatprep.subr.mxu0 0.0
        %1409 = vmatpush1.msra.mxu0 0.0
        %1410 = vmatprep.subr.mxu0 0.0
        %1411 = vmatpush1.msra.mxu0 0.0
        %1412 = vmatprep.subr.mxu0 0.0
        %1413 = vmatpush1.msra.mxu0 0.0
        %1414 = vmatprep.subr.mxu0 0.0
        %1415 = vmatpush1.msra.mxu0 0.0
        %1416 = vmatprep.subr.mxu0 0.0
        %1417 = vmatpush1.msra.mxu0 0.0
        %1418 = vmatprep.subr.mxu0 0.0
        %1419 = vmatpush1.msra.mxu0 0.0
        %1420 = vmatprep.subr.mxu0 0.0
        %1421 = vmatpush1.msra.mxu0 0.0
        %1422 = vmatprep.subr.mxu0 0.0
        %1423 = vmatpush1.msra.mxu0 0.0
        %1424 = vmatprep.subr.mxu0 0.0
        %1425 = vmatpush1.msra.mxu0 0.0
        %1426 = vmatprep.subr.mxu0 0.0
        %1427 = vmatpush1.msra.mxu0 0.0
        %1428 = vmatprep.subr.mxu0 0.0
        %1429 = vmatpush1.msra.mxu0 0.0
        %1430 = vmatprep.subr.mxu0 0.0
        %1431 = vmatpush1.msra.mxu0 0.0
        %1432 = vmatprep.subr.mxu0 0.0
        %1433 = vmatpush1.msra.mxu0 0.0
        %1434 = vmatprep.subr.mxu0 0.0
        %1435 = vmatpush1.msra.mxu0 0.0
        %1436 = vmatprep.subr.mxu0 0.0
        %1437 = vmatpush1.msra.mxu0 0.0
        %1438 = vmatprep.subr.mxu0 0.0
        %1439 = vmatpush1.msra.mxu0 0.0
        %1440 = vmatprep.subr.mxu0 0.0
        %1441 = vmatpush1.msra.mxu0 0.0
        %1442 = vmatprep.subr.mxu0 0.0
        %1443 = vmatpush1.msra.mxu0 0.0
        %1444 = vmatprep.subr.mxu0 0.0
        %1445 = vmatpush1.msra.mxu0 0.0
        %1446 = vmatprep.subr.mxu0 0.0
        %1447 = vmatpush1.msra.mxu0 0.0
        %1448 = vmatprep.subr.mxu0 0.0
        %1449 = vmatpush1.msra.mxu0 0.0
        %1450 = vmatprep.subr.mxu0 0.0
        %1451 = vmatpush1.msra.mxu0 0.0
        %1452 = vmatprep.subr.mxu0 0.0
        %1453 = vmatpush1.msra.mxu0 0.0
        %1454 = vmatprep.subr.mxu0 0.0
        %1455 = vmatpush1.msra.mxu0 0.0
        %1456 = vmatprep.subr.mxu0 0.0
        %1457 = vmatpush1.msra.mxu0 0.0
        %1458 = vmatprep.subr.mxu0 0.0
        %1459 = vmatpush1.msra.mxu0 0.0
        %1460 = vmatprep.subr.mxu0 0.0
        %1461 = vmatpush1.msra.mxu0 0.0
        %1462 = vmatprep.subr.mxu0 0.0
        %1463 = vmatpush1.msra.mxu0 0.0
        %1464 = vmatprep.subr.mxu0 0.0
        %1465 = vmatpush1.msra.mxu0 0.0
        %1466 = vmatprep.subr.mxu0 0.0
        %1467 = vmatpush1.msra.mxu0 0.0
        %1468 = vmatprep.mubr.f32.mxu0 0.0
        %1469 = vmatmul.mubr.f32.gmra.mrb[0].mxu0 %v1402
        %v1470 = vpop.f32.mrb[0].mxu0
        %v1471 = vadd.f32 0.0, %v1470
        %v1472 = vpop.f32.mrb[0].mxu0
        %v1473 = vadd.f32 0.0, %v1472
        %1474 = vdwg.mxu0
        %1475 = vmatprep.subr.mxu0 0.0
        %1476 = vmatpush1.msra.mxu0 %v389
        %1477 = vmatprep.subr.mxu0 0.0
        %1478 = vmatpush1.msra.mxu0 %v392
        %1479 = vmatprep.subr.mxu0 0.0
        %1480 = vmatpush1.msra.mxu0 0.0
        %1481 = vmatprep.subr.mxu0 0.0
        %1482 = vmatpush1.msra.mxu0 0.0
        %1483 = vmatprep.subr.mxu0 0.0
        %1484 = vmatpush1.msra.mxu0 0.0
        %1485 = vmatprep.subr.mxu0 0.0
        %1486 = vmatpush1.msra.mxu0 0.0
        %1487 = vmatprep.subr.mxu0 0.0
        %1488 = vmatpush1.msra.mxu0 0.0
        %1489 = vmatprep.subr.mxu0 0.0
        %1490 = vmatpush1.msra.mxu0 0.0
        %1491 = vmatprep.subr.mxu0 0.0
        %1492 = vmatpush1.msra.mxu0 0.0
        %1493 = vmatprep.subr.mxu0 0.0
        %1494 = vmatpush1.msra.mxu0 0.0
        %1495 = vmatprep.subr.mxu0 0.0
        %1496 = vmatpush1.msra.mxu0 0.0
        %1497 = vmatprep.subr.mxu0 0.0
        %1498 = vmatpush1.msra.mxu0 0.0
        %1499 = vmatprep.subr.mxu0 0.0
        %1500 = vmatpush1.msra.mxu0 0.0
        %1501 = vmatprep.subr.mxu0 0.0
        %1502 = vmatpush1.msra.mxu0 0.0
        %1503 = vmatprep.subr.mxu0 0.0
        %1504 = vmatpush1.msra.mxu0 0.0
        %1505 = vmatprep.subr.mxu0 0.0
        %1506 = vmatpush1.msra.mxu0 0.0
        %1507 = vmatprep.subr.mxu0 0.0
        %1508 = vmatpush1.msra.mxu0 0.0
        %1509 = vmatprep.subr.mxu0 0.0
        %1510 = vmatpush1.msra.mxu0 0.0
        %1511 = vmatprep.subr.mxu0 0.0
        %1512 = vmatpush1.msra.mxu0 0.0
        %1513 = vmatprep.subr.mxu0 0.0
        %1514 = vmatpush1.msra.mxu0 0.0
        %1515 = vmatprep.subr.mxu0 0.0
        %1516 = vmatpush1.msra.mxu0 0.0
        %1517 = vmatprep.subr.mxu0 0.0
        %1518 = vmatpush1.msra.mxu0 0.0
        %1519 = vmatprep.subr.mxu0 0.0
        %1520 = vmatpush1.msra.mxu0 0.0
        %1521 = vmatprep.subr.mxu0 0.0
        %1522 = vmatpush1.msra.mxu0 0.0
        %1523 = vmatprep.subr.mxu0 0.0
        %1524 = vmatpush1.msra.mxu0 0.0
        %1525 = vmatprep.subr.mxu0 0.0
        %1526 = vmatpush1.msra.mxu0 0.0
        %1527 = vmatprep.subr.mxu0 0.0
        %1528 = vmatpush1.msra.mxu0 0.0
        %1529 = vmatprep.subr.mxu0 0.0
        %1530 = vmatpush1.msra.mxu0 0.0
        %1531 = vmatprep.subr.mxu0 0.0
        %1532 = vmatpush1.msra.mxu0 0.0
        %1533 = vmatprep.subr.mxu0 0.0
        %1534 = vmatpush1.msra.mxu0 0.0
        %1535 = vmatprep.subr.mxu0 0.0
        %1536 = vmatpush1.msra.mxu0 0.0
        %1537 = vmatprep.subr.mxu0 0.0
        %1538 = vmatpush1.msra.mxu0 0.0
        %1539 = vmatprep.mubr.f32.mxu0 0.0
        %1540 = vmatmul.mubr.f32.gmra.mrb[0].mxu0 %v1402
        %v1541 = vpop.f32.mrb[0].mxu0
        %v1542 = vadd.f32 0.0, %v1541
        %v1543 = vpop.f32.mrb[0].mxu0
        %1544 = vdwg.mxu0
        %1545 = vmatprep.subr.mxu0 %v394
        %1546 = vmatpush1.msra.mxu0 %v393
        %1547 = vmatprep.subr.mxu0 %v396
        %1548 = vmatpush1.msra.mxu0 %v395
        %1549 = vmatprep.subr.mxu0 %v398
        %1550 = vmatpush1.msra.mxu0 %v397
        %1551 = vmatprep.subr.mxu0 %v400
        %1552 = vmatpush1.msra.mxu0 %v399
        %1553 = vmatprep.subr.mxu0 %v402
        %1554 = vmatpush1.msra.mxu0 %v401
        %1555 = vmatprep.subr.mxu0 %v404
        %1556 = vmatpush1.msra.mxu0 %v403
        %1557 = vmatprep.subr.mxu0 %v406
        %1558 = vmatpush1.msra.mxu0 %v405
        %1559 = vmatprep.subr.mxu0 %v408
        %1560 = vmatpush1.msra.mxu0 %v407
        %1561 = vmatprep.subr.mxu0 %v410
        %1562 = vmatpush1.msra.mxu0 %v409
        %1563 = vmatprep.subr.mxu0 %v412
        %1564 = vmatpush1.msra.mxu0 %v411
        %1565 = vmatprep.subr.mxu0 %v414
        %1566 = vmatpush1.msra.mxu0 %v413
        %1567 = vmatprep.subr.mxu0 %v416
        %1568 = vmatpush1.msra.mxu0 %v415
        %1569 = vmatprep.subr.mxu0 %v418
        %1570 = vmatpush1.msra.mxu0 %v417
        %1571 = vmatprep.subr.mxu0 %v420
        %1572 = vmatpush1.msra.mxu0 %v419
        %1573 = vmatprep.subr.mxu0 %v422
        %1574 = vmatpush1.msra.mxu0 %v421
        %1575 = vmatprep.subr.mxu0 %v424
        %1576 = vmatpush1.msra.mxu0 %v423
        %1577 = vmatprep.subr.mxu0 0.0
        %1578 = vmatpush1.msra.mxu0 0.0
        %1579 = vmatprep.subr.mxu0 0.0
        %1580 = vmatpush1.msra.mxu0 0.0
        %1581 = vmatprep.subr.mxu0 0.0
        %1582 = vmatpush1.msra.mxu0 0.0
        %1583 = vmatprep.subr.mxu0 0.0
        %1584 = vmatpush1.msra.mxu0 0.0
        %1585 = vmatprep.subr.mxu0 0.0
        %1586 = vmatpush1.msra.mxu0 0.0
        %1587 = vmatprep.subr.mxu0 0.0
        %1588 = vmatpush1.msra.mxu0 0.0
        %1589 = vmatprep.subr.mxu0 0.0
        %1590 = vmatpush1.msra.mxu0 0.0
        %1591 = vmatprep.subr.mxu0 0.0
        %1592 = vmatpush1.msra.mxu0 0.0
        %1593 = vmatprep.subr.mxu0 0.0
        %1594 = vmatpush1.msra.mxu0 0.0
        %1595 = vmatprep.subr.mxu0 0.0
        %1596 = vmatpush1.msra.mxu0 0.0
        %1597 = vmatprep.subr.mxu0 0.0
        %1598 = vmatpush1.msra.mxu0 0.0
        %1599 = vmatprep.subr.mxu0 0.0
        %1600 = vmatpush1.msra.mxu0 0.0
        %1601 = vmatprep.subr.mxu0 0.0
        %1602 = vmatpush1.msra.mxu0 0.0
        %1603 = vmatprep.subr.mxu0 0.0
        %1604 = vmatpush1.msra.mxu0 0.0
        %1605 = vmatprep.subr.mxu0 0.0
        %1606 = vmatpush1.msra.mxu0 0.0
        %1607 = vmatprep.subr.mxu0 0.0
        %1608 = vmatpush1.msra.mxu0 0.0
        %1609 = vmatprep.mubr.f32.mxu0 0.0
        %1610 = vmatmul.mubr.f32.gmra.mrb[0].mxu0 %v1396
        %v1611 = vpop.f32.mrb[0].mxu0
        %v1612 = vadd.f32 0.0, %v1611
        %v1613 = vpop.f32.mrb[0].mxu0
        %v1614 = vadd.f32 0.0, %v1613
        %1615 = vdwg.mxu0
        %v1616 = vadd.f32 %v1471, %v1612
        %v1617 = vadd.f32 %v1473, %v1614
        %v1618 = vadd.f32 %v1616, %v667
        %v1619 = vadd.f32 %v1617, %v671
        %v1620 = vxor.u32 %v1618, 2147483648
        %v1621 = vmul.f32 %v1620, 1.442695
        %v1622 = vpow.pop %v1621
        %v1623 = vadd.f32 %v1622, 1.0
        %v1624 = vrcp.pop %v1623
        %v1625 = vmul.f32 1.0, %v1624
        %v1626 = vxor.u32 %v1619, 2147483648
        %v1627 = vmul.f32 %v1626, 1.442695
        %v1628 = vpow.pop %v1627
        %v1629 = vadd.f32 %v1628, 1.0
        %v1630 = vrcp.pop %v1629
        %v1631 = vmul.f32 1.0, %v1630
        %v1632 = vadd.f32 %v1542, %v692
        %v1633 = vmul.f32 %v1631, %v1396
        %1634 = vmatprep.subr.mxu0 0.0
        %1635 = vmatpush1.msra.mxu0 %v425
        %1636 = vmatprep.subr.mxu0 0.0
        %1637 = vmatpush1.msra.mxu0 %v426
        %1638 = vmatprep.subr.mxu0 0.0
        %1639 = vmatpush1.msra.mxu0 %v427
        %1640 = vmatprep.subr.mxu0 0.0
        %1641 = vmatpush1.msra.mxu0 %v428
        %1642 = vmatprep.subr.mxu0 0.0
        %1643 = vmatpush1.msra.mxu0 %v429
        %1644 = vmatprep.subr.mxu0 0.0
        %1645 = vmatpush1.msra.mxu0 %v430
        %1646 = vmatprep.subr.mxu0 0.0
        %1647 = vmatpush1.msra.mxu0 %v431
        %1648 = vmatprep.subr.mxu0 0.0
        %1649 = vmatpush1.msra.mxu0 %v432
        %1650 = vmatprep.subr.mxu0 0.0
        %1651 = vmatpush1.msra.mxu0 %v433
        %1652 = vmatprep.subr.mxu0 0.0
        %1653 = vmatpush1.msra.mxu0 %v434
        %1654 = vmatprep.subr.mxu0 0.0
        %1655 = vmatpush1.msra.mxu0 %v435
        %1656 = vmatprep.subr.mxu0 0.0
        %1657 = vmatpush1.msra.mxu0 %v436
        %1658 = vmatprep.subr.mxu0 0.0
        %1659 = vmatpush1.msra.mxu0 %v437
        %1660 = vmatprep.subr.mxu0 0.0
        %1661 = vmatpush1.msra.mxu0 %v438
        %1662 = vmatprep.subr.mxu0 0.0
        %1663 = vmatpush1.msra.mxu0 %v439
        %1664 = vmatprep.subr.mxu0 0.0
        %1665 = vmatpush1.msra.mxu0 %v440
        %1666 = vmatprep.subr.mxu0 0.0
        %1667 = vmatpush1.msra.mxu0 0.0
        %1668 = vmatprep.subr.mxu0 0.0
        %1669 = vmatpush1.msra.mxu0 0.0
        %1670 = vmatprep.subr.mxu0 0.0
        %1671 = vmatpush1.msra.mxu0 0.0
        %1672 = vmatprep.subr.mxu0 0.0
        %1673 = vmatpush1.msra.mxu0 0.0
        %1674 = vmatprep.subr.mxu0 0.0
        %1675 = vmatpush1.msra.mxu0 0.0
        %1676 = vmatprep.subr.mxu0 0.0
        %1677 = vmatpush1.msra.mxu0 0.0
        %1678 = vmatprep.subr.mxu0 0.0
        %1679 = vmatpush1.msra.mxu0 0.0
        %1680 = vmatprep.subr.mxu0 0.0
        %1681 = vmatpush1.msra.mxu0 0.0
        %1682 = vmatprep.subr.mxu0 0.0
        %1683 = vmatpush1.msra.mxu0 0.0
        %1684 = vmatprep.subr.mxu0 0.0
        %1685 = vmatpush1.msra.mxu0 0.0
        %1686 = vmatprep.subr.mxu0 0.0
        %1687 = vmatpush1.msra.mxu0 0.0
        %1688 = vmatprep.subr.mxu0 0.0
        %1689 = vmatpush1.msra.mxu0 0.0
        %1690 = vmatprep.subr.mxu0 0.0
        %1691 = vmatpush1.msra.mxu0 0.0
        %1692 = vmatprep.subr.mxu0 0.0
        %1693 = vmatpush1.msra.mxu0 0.0
        %1694 = vmatprep.subr.mxu0 0.0
        %1695 = vmatpush1.msra.mxu0 0.0
        %1696 = vmatprep.subr.mxu0 0.0
        %1697 = vmatpush1.msra.mxu0 0.0
        %1698 = vmatprep.mubr.f32.mxu0 0.0
        %1699 = vmatmul.mubr.f32.gmra.mrb[0].mxu0 %v1633
        %v1700 = vpop.f32.mrb[0].mxu0
        %v1701 = vadd.f32 0.0, %v1700
        %v1702 = vpop.f32.mrb[0].mxu0
        %1703 = vdwg.mxu0
        %v1704 = vadd.f32 %v1632, %v1701
        %v1705 = vsub.f32 1.0, %v1625
        %v1706 = vmul.f32 %v1705, %v1396
        %v1707 = vtanh.pop %v1704
        %v1708 = vmul.f32 %v1625, %v1707
        %v1709 = vadd.f32 %v1706, %v1708
        %s1710 = scalar_lea.vmem %s376, 24 [#allocation11]
        %1711 = vst [vmem:[%s1710] sm:$0xff] %v1709
        %1712 = vst [vmem:[#allocation12] sm:$0xff] %v1709
        %s1713 = sand.u32 %s189, 1
        %s1714 = scalar_lea.sflag [#allocation4], %s1713
        %s1715 = sand.u32 %s189, 1
        %s1716 = smul.addr %s1715, 32
        %s1717 = scalar_lea.vmem [#allocation11], %s1716
        // Predicated region
        $region73: #{tpu_custom_call.1} parent=47 // pred_check
          %p1718 = pneg %p199
        $region74: #{tpu_custom_call.1} parent=47 // pred_check_branch
          %1720 = sbr.rel (%p1718) target = $region76
        $region75: #{tpu_custom_call.1} parent=47 // pred_region
          %s1721 = smul.u32 4, %s29
          %s1723 = ssub.s32 512, 512
          %1724 = vsyncadd %s1714, %s1723
          %s1725 = smul.addr %s1721, 128
          %s1726 = scalar_lea.hbm %s7, %s1725
          %s1727 = sshll.u32 %s1717, 4
          %s1728 = int_to_ptr.vmem [resolvable:$true] %s1727
          %1733 = dma.vmem_to_hbm [thread:$0]  %s1728, 512, %s1726, %s1714, 128, 128, 8
        $region76: #{tpu_custom_call.1} parent=47 // pred_fallthru
          _
        // Predicated region
        $region77: #{tpu_custom_call.1} parent=47 // pred_check
          %p1734 = pneg %p220
        $region78: #{tpu_custom_call.1} parent=47 // pred_check_branch
          %1736 = sbr.rel (%p1734) target = $region80
        $region79: #{tpu_custom_call.1} parent=47 // pred_region
          %s1738 = ssub.s32 128, 128
          %1739 = vsyncadd [#allocation13], %s1738
          %s1741 = sshll.u32 [#allocation12], 4
          %s1742 = int_to_ptr.vmem [resolvable:$true] %s1741
          %1744 = dma.vmem_to_hbm [thread:$0]  %s1742, 128, %s8, [#allocation13]
        $region80: #{tpu_custom_call.1} parent=47 // pred_fallthru
          _
        // Predicated region
        $region81: #{tpu_custom_call.1} parent=47 // pred_check
          %p1745 = pneg %p220
        $region82: #{tpu_custom_call.1} parent=47 // pred_check_branch
          %1747 = sbr.rel (%p1745) target = $region84
        $region83: #{tpu_custom_call.1} parent=47 // pred_region
          %1748 = dma.done [#allocation13], 128
        $region84: #{tpu_custom_call.1} parent=47 // pred_fallthru
          _
      $region48: #{tpu_custom_call.1} parent=5 // pred_fallthru
        _
      %p1749 = scmp.le.s32.totalorder 2, %s24
      // Predicated region
      $region85: #{tpu_custom_call.1} parent=5 // pred_check
        %p1750 = pneg %p1749
      $region86: #{tpu_custom_call.1} parent=5 // pred_check_branch
        %1752 = sbr.rel (%p1750) target = $region88
      $region87: #{tpu_custom_call.1} parent=5 // pred_region
        %s1753 = ssub.s32 %s24, 2
        // Predicated region
        $region89: #{tpu_custom_call.1} parent=87 // pred_check
          %p1754 = pneg %p205
        $region90: #{tpu_custom_call.1} parent=87 // pred_check_branch
          %1756 = sbr.rel (%p1754) target = $region92
        $region91: #{tpu_custom_call.1} parent=87 // pred_region
          %s1757 = sand.u32 %s190, 1
          %s1758 = scalar_lea.sflag [#allocation4], %s1757
          %s1759 = sand.u32 %s190, 1
          %s1760 = smul.addr %s1759, 32
          %s1761 = scalar_lea.vmem [#allocation11], %s1760
          %1762 = dma.done %s1758, 512
        $region92: #{tpu_custom_call.1} parent=87 // pred_fallthru
          _
      $region88: #{tpu_custom_call.1} parent=5 // pred_fallthru
        _
    $region6: #{tpu_custom_call.1} parent=1 // loop_footer
      %s28 = sadd.s32 1, %s24
    $region7: #{tpu_custom_call.1} parent=1 // loop_footer_branch
      %23 = sbr.rel target = $region3
    $region8: #{tpu_custom_call.1} parent=1 // loop_exit
      _
    %1763 = vsyncpa [#allocation3], 1
    %s1764 = scalar_lea.sflag [#allocation3], 1
    %1765 = vsyncpa %s1764, 1
    %1766 = vsyncpa [#allocation6], 1
    %1767 = vsyncpa [#allocation9], 1
    %1768 = vsyncpa [#allocation4], 1
    %s1769 = scalar_lea.sflag [#allocation4], 1
    %1770 = vsyncpa %s1769, 1
    %1771 = vsyncpa [#allocation13], 1

</llo_original>
